<compile_context>
chip_gen: v5e
topology: v5e:2x2
jax: 0.10.0
libtpu: 0.0.40
codegen_flags: <defaults>
</compile_context>

<pallas_src>
import functools

import jax
import jax.numpy as jnp
from jax.experimental import pallas as pl
from jax.experimental.pallas import tpu as pltpu

LANE = 128
_LN_EPS = 1e-5


def _round_up(x, m):
    return (x + m - 1) // m * m


def mha_kernel(x_ref, wqkv_ref, bqkv_ref, wo_ref, bo_ref, gamma_ref, beta_ref,
               out_ref, ctx_sc, *, num_head, dh_pad, dim_model):
    bt, s, d_pad = x_ref.shape
    hd_pad = num_head * dh_pad

    x2 = x_ref[...].reshape(bt * s, d_pad)                       # (Bt*S, Dp)

    # Fused Q/K/V projection: one wide MXU matmul (N = 3*H*dh_pad).
    qkv = jnp.dot(x2, wqkv_ref[...], preferred_element_type=jnp.float32)
    qkv = qkv + bqkv_ref[...]                                    # (Bt*S, 3*HDp)

    # Per-head attention.  dh_pad is a multiple of 128, so every lane slice
    # below is aligned (no XLU shuffles / masked stores).  Padded q/k/v lanes
    # are zero, so the unscaled scores are unaffected by the padding.
    for h in range(num_head):                                    # small static loop
        lo = h * dh_pad
        qh = qkv[:, lo:lo + dh_pad].reshape(bt, s, dh_pad)
        kh = qkv[:, hd_pad + lo:hd_pad + lo + dh_pad].reshape(bt, s, dh_pad)
        vh = qkv[:, 2 * hd_pad + lo:2 * hd_pad + lo + dh_pad].reshape(bt, s, dh_pad)

        # Unscaled attention scores (scale=False in the reference module).
        scores = jnp.einsum('bqd,bkd->bqk', qh, kh,
                            preferred_element_type=jnp.float32)  # (Bt, S, S)
        scores = scores - jnp.max(scores, axis=-1, keepdims=True)
        p = jnp.exp(scores)
        p = p * pl.reciprocal(jnp.sum(p, axis=-1, keepdims=True), approx=True)
        ch = jnp.einsum('bqk,bkd->bqd', p, vh,
                        preferred_element_type=jnp.float32)      # (Bt, S, dhp)
        # Lane-aligned write into the context slab (replaces concatenate).
        ctx_sc[:, lo:lo + dh_pad] = ch.reshape(bt * s, dh_pad)

    # Output projection + residual + LayerNorm.
    o = jnp.dot(ctx_sc[...], wo_ref[...], preferred_element_type=jnp.float32)
    y = x2 + o + bo_ref[...]                                     # padded lanes stay 0

    # Single-pass LayerNorm statistics over the TRUE feature count (padded
    # lanes of y are exactly zero, so plain sums are correct).
    inv_d = 1.0 / dim_model
    mean = jnp.sum(y, axis=-1, keepdims=True) * inv_d
    var = jnp.sum(y * y, axis=-1, keepdims=True) * inv_d - mean * mean
    y_hat = (y - mean) * jax.lax.rsqrt(var + _LN_EPS)
    out = y_hat * gamma_ref[...] + beta_ref[...]
    out_ref[...] = out.reshape(bt, s, d_pad).astype(out_ref.dtype)


def multi_head_attention(x, params, *, num_head, dim_head, batch_tile=None):
    """Pallas forward pass of the PyTorch multi_head_attention module."""
    B, S, D = x.shape
    HD = num_head * dim_head
    f32 = jnp.float32

    d_pad = _round_up(D, LANE)
    dh_pad = _round_up(dim_head, LANE)
    hd_pad = num_head * dh_pad

    bt = B if batch_tile is None else batch_tile
    assert B % bt == 0, "batch_tile must divide batch for this script"
    nb = B // bt

    # --- Pack & zero-pad parameters so the kernel only sees lane-dense data ---
    def pad_head_cols(w, b):
        # (D, HD)/(1, HD) -> (d_pad, hd_pad)/(1, hd_pad); each head's dim_head
        # columns land at a lane-aligned offset h*dh_pad.
        wp = jnp.zeros((d_pad, hd_pad), f32)
        bp = jnp.zeros((1, hd_pad), f32)
        for h in range(num_head):
            src = slice(h * dim_head, (h + 1) * dim_head)
            dst = slice(h * dh_pad, h * dh_pad + dim_head)
            wp = wp.at[:D, dst].set(w[:, src])
            bp = bp.at[:, dst].set(b[:, src])
        return wp, bp

    wq_p, bq_p = pad_head_cols(params["wq"], params["bq"])
    wk_p, bk_p = pad_head_cols(params["wk"], params["bk"])
    wv_p, bv_p = pad_head_cols(params["wv"], params["bv"])
    wqkv = jnp.concatenate([wq_p, wk_p, wv_p], axis=1)           # (d_pad, 3*hd_pad)
    bqkv = jnp.concatenate([bq_p, bk_p, bv_p], axis=1)           # (1, 3*hd_pad)

    wo_p = jnp.zeros((hd_pad, d_pad), f32)
    for h in range(num_head):
        wo_p = wo_p.at[h * dh_pad:h * dh_pad + dim_head, :D].set(
            params["wo"][h * dim_head:(h + 1) * dim_head, :])
    bo_p = jnp.zeros((1, d_pad), f32).at[:, :D].set(params["bo"])
    gamma_p = jnp.zeros((1, d_pad), f32).at[:, :D].set(params["gamma"])
    beta_p = jnp.zeros((1, d_pad), f32).at[:, :D].set(params["beta"])

    x_p = jnp.zeros((B, S, d_pad), f32).at[:, :, :D].set(x)

    kern = functools.partial(mha_kernel, num_head=num_head, dh_pad=dh_pad,
                             dim_model=D)

    # Constant-index (grid-invariant) parameter blocks.
    const = lambda shape: pl.BlockSpec(shape, lambda b: tuple(0 for _ in shape))

    out_p = pl.pallas_call(
        kern,
        out_shape=jax.ShapeDtypeStruct((B, S, d_pad), x.dtype),
        grid_spec=pltpu.PrefetchScalarGridSpec(
            num_scalar_prefetch=0,
            grid=(nb,),
            in_specs=[
                pl.BlockSpec((bt, S, d_pad), lambda b: (b, 0, 0)),   # x
                const((d_pad, 3 * hd_pad)),                          # Wqkv (fused)
                const((1, 3 * hd_pad)),                              # bqkv
                const((hd_pad, d_pad)),                              # Wo
                const((1, d_pad)),                                   # bo
                const((1, d_pad)),                                   # gamma
                const((1, d_pad)),                                   # beta
            ],
            out_specs=pl.BlockSpec((bt, S, d_pad), lambda b: (b, 0, 0)),
            scratch_shapes=[pltpu.VMEM((bt * S, hd_pad), jnp.float32)],
        ),
        compiler_params=pltpu.CompilerParams(
            dimension_semantics=("parallel",)),
    )(x_p, wqkv, bqkv, wo_p, bo_p, gamma_p, beta_p)

    return out_p[:, :, :D]


def reference(x, params, *, num_head, dim_head):
    """Pure-JAX reference mirroring the PyTorch forward (eval mode)."""
    B, S, D = x.shape
    q = x @ params["wq"] + params["bq"][0]
    k = x @ params["wk"] + params["bk"][0]
    v = x @ params["wv"] + params["bv"][0]
    q = q.reshape(B, S, num_head, dim_head).transpose(0, 2, 1, 3)
    k = k.reshape(B, S, num_head, dim_head).transpose(0, 2, 1, 3)
    v = v.reshape(B, S, num_head, dim_head).transpose(0, 2, 1, 3)
    scores = jnp.einsum("bhqd,bhkd->bhqk", q, k)        # unscaled (scale=False)
    p = jax.nn.softmax(scores, axis=-1)
    ctx = jnp.einsum("bhqk,bhkd->bhqd", p, v)
    ctx = ctx.transpose(0, 2, 1, 3).reshape(B, S, num_head * dim_head)
    o = ctx @ params["wo"] + params["bo"][0]
    y = x + o
    mean = jnp.mean(y, axis=-1, keepdims=True)
    var = jnp.mean((y - mean) ** 2, axis=-1, keepdims=True)
    return (y - mean) / jnp.sqrt(var + _LN_EPS) * params["gamma"][0] + params["beta"][0]


if __name__ == "__main__":
    # Small shapes consistent with the module: dim_model divisible by num_head=5.
    batch, seq_len, dim_model, num_head = 2, 8, 30, 5
    dim_head = dim_model // num_head
    HD = num_head * dim_head

    key = jax.random.PRNGKey(0)
    kx, kq, kk, kv, ko = jax.random.split(key, 5)

    x = jax.random.normal(kx, (batch, seq_len, dim_model), dtype=jnp.float32)

    def init_linear(k, d_in, d_out):
        kw, kb = jax.random.split(k)
        lim = 1.0 / jnp.sqrt(d_in)
        w = jax.random.uniform(kw, (d_in, d_out), jnp.float32, -lim, lim)
        b = jax.random.uniform(kb, (1, d_out), jnp.float32, -lim, lim)
        return w, b

    wq, bq = init_linear(kq, dim_model, HD)
    wk, bk = init_linear(kk, dim_model, HD)
    wv, bv = init_linear(kv, dim_model, HD)
    wo, bo = init_linear(ko, HD, dim_model)

    params = dict(
        wq=wq, bq=bq, wk=wk, bk=bk, wv=wv, bv=bv, wo=wo, bo=bo,
        gamma=jnp.ones((1, dim_model), jnp.float32),
        beta=jnp.zeros((1, dim_model), jnp.float32),
    )

    out = multi_head_attention(x, params, num_head=num_head, dim_head=dim_head)
    out = jax.block_until_ready(out)

    ref = reference(x, params, num_head=num_head, dim_head=dim_head)
    # Tolerance accommodates the approximate (EUP) softmax reciprocal.
    assert out.shape == ref.shape
    assert jnp.allclose(out, ref, atol=1e-2, rtol=1e-2), "mismatch vs reference"

    print("KERNEL_OK")
</pallas_src>

<mosaic_0001>
module attributes {stable_mosaic.version = 11 : i64} {
  func.func @mha_kernel(%arg0: i32, %arg1: memref<2x8x128xf32, #tpu.memory_space<vmem>>, %arg2: memref<128x1920xf32, #tpu.memory_space<vmem>>, %arg3: memref<1x1920xf32, #tpu.memory_space<vmem>>, %arg4: memref<640x128xf32, #tpu.memory_space<vmem>>, %arg5: memref<1x128xf32, #tpu.memory_space<vmem>>, %arg6: memref<1x128xf32, #tpu.memory_space<vmem>>, %arg7: memref<1x128xf32, #tpu.memory_space<vmem>>, %arg8: memref<2x8x128xf32, #tpu.memory_space<vmem>>, %arg9: memref<16x640xf32, #tpu.memory_space<vmem>>) attributes {dimension_semantics = [#tpu.dimension_semantics<parallel>], iteration_bounds = array<i64: 1>, scalar_prefetch = 0 : i64, scratch_operands = 1 : i64, tpu.core_type = #tpu.core_type<tc>, window_params = [{transform_indices = @transform_0, window_bounds = array<i64: 2, 8, 128>}, {pipeline_mode = #tpu.pipeline_mode<synchronous>, transform_indices = @transform_1, window_bounds = array<i64: 128, 1920>}, {pipeline_mode = #tpu.pipeline_mode<synchronous>, transform_indices = @transform_2, window_bounds = array<i64: 1, 1920>}, {pipeline_mode = #tpu.pipeline_mode<synchronous>, transform_indices = @transform_3, window_bounds = array<i64: 640, 128>}, {pipeline_mode = #tpu.pipeline_mode<synchronous>, transform_indices = @transform_4, window_bounds = array<i64: 1, 128>}, {pipeline_mode = #tpu.pipeline_mode<synchronous>, transform_indices = @transform_5, window_bounds = array<i64: 1, 128>}, {pipeline_mode = #tpu.pipeline_mode<synchronous>, transform_indices = @transform_6, window_bounds = array<i64: 1, 128>}, {transform_indices = @transform_7, window_bounds = array<i64: 2, 8, 128>}]} {
    %c0 = arith.constant 0 : index
    %c0_0 = arith.constant 0 : index
    %c0_1 = arith.constant 0 : index
    %0 = vector.load %arg1[%c0, %c0_0, %c0_1] : memref<2x8x128xf32, #tpu.memory_space<vmem>>, vector<2x8x128xf32>
    %1 = vector.shape_cast %0 : vector<2x8x128xf32> to vector<16x128xf32>
    %c0_2 = arith.constant 0 : index
    %c0_3 = arith.constant 0 : index
    %2 = vector.load %arg2[%c0_2, %c0_3] : memref<128x1920xf32, #tpu.memory_space<vmem>>, vector<128x1920xf32>
    %cst = arith.constant dense<0.000000e+00> : vector<16x1920xf32>
    %3 = tpu.matmul %1, %2, %cst {dimension_numbers = #tpu.dot_dimension_numbers<[1], [0], [0], [1], [0, 0, 1, 1], [], []>} : vector<16x128xf32>, vector<128x1920xf32>, vector<16x1920xf32> -> vector<16x1920xf32>
    %c0_4 = arith.constant 0 : index
    %c0_5 = arith.constant 0 : index
    %4 = vector.load %arg3[%c0_4, %c0_5] : memref<1x1920xf32, #tpu.memory_space<vmem>>, vector<1x1920xf32>
    %5 = vector.broadcast %4 : vector<1x1920xf32> to vector<16x1920xf32>
    %6 = arith.addf %3, %5 : vector<16x1920xf32>
    %7 = vector.extract_strided_slice %6 {offsets = [0, 0], sizes = [16, 128], strides = [1, 1]} : vector<16x1920xf32> to vector<16x128xf32>
    %8 = vector.shape_cast %7 : vector<16x128xf32> to vector<2x8x128xf32>
    %9 = vector.extract_strided_slice %6 {offsets = [0, 640], sizes = [16, 128], strides = [1, 1]} : vector<16x1920xf32> to vector<16x128xf32>
    %10 = vector.shape_cast %9 : vector<16x128xf32> to vector<2x8x128xf32>
    %11 = vector.extract_strided_slice %6 {offsets = [0, 1280], sizes = [16, 128], strides = [1, 1]} : vector<16x1920xf32> to vector<16x128xf32>
    %12 = vector.shape_cast %11 : vector<16x128xf32> to vector<2x8x128xf32>
    "tpu.trace_start"() <{level = 10 : i32, message = "bqd,bkd->bqk"}> : () -> ()
    %cst_6 = arith.constant dense<0.000000e+00> : vector<2x8x8xf32>
    %13 = tpu.matmul %8, %10, %cst_6 {dimension_numbers = #tpu.dot_dimension_numbers<[2], [2], [1], [1], [0, 0, 0, 1, 1, 1], [0], [0]>} : vector<2x8x128xf32>, vector<2x8x128xf32>, vector<2x8x8xf32> -> vector<2x8x8xf32>
    "tpu.trace_stop"() : () -> ()
    %cst_7 = arith.constant dense<0xFF800000> : vector<2x8xf32>
    %14 = vector.multi_reduction <maximumf>, %13, %cst_7 [2] : vector<2x8x8xf32> to vector<2x8xf32>
    %15 = vector.shape_cast %14 : vector<2x8xf32> to vector<2x8x1xf32>
    %16 = vector.broadcast %15 : vector<2x8x1xf32> to vector<2x8x8xf32>
    %17 = arith.subf %13, %16 : vector<2x8x8xf32>
    %18 = math.exp %17 : vector<2x8x8xf32>
    %cst_8 = arith.constant dense<0.000000e+00> : vector<2x8xf32>
    %19 = vector.multi_reduction <add>, %18, %cst_8 [2] : vector<2x8x8xf32> to vector<2x8xf32>
    %20 = vector.shape_cast %19 : vector<2x8xf32> to vector<2x8x1xf32>
    %21 = tpu.reciprocal %20 {approx = true} : vector<2x8x1xf32> -> vector<2x8x1xf32>
    %22 = vector.broadcast %21 : vector<2x8x1xf32> to vector<2x8x8xf32>
    %23 = arith.mulf %18, %22 : vector<2x8x8xf32>
    "tpu.trace_start"() <{level = 10 : i32, message = "bqk,bkd->bqd"}> : () -> ()
    %cst_9 = arith.constant dense<0.000000e+00> : vector<2x8x128xf32>
    %24 = tpu.matmul %23, %12, %cst_9 {dimension_numbers = #tpu.dot_dimension_numbers<[2], [1], [1], [2], [0, 0, 0, 1, 1, 2], [0], [0]>} : vector<2x8x8xf32>, vector<2x8x128xf32>, vector<2x8x128xf32> -> vector<2x8x128xf32>
    "tpu.trace_stop"() : () -> ()
    %25 = vector.shape_cast %24 : vector<2x8x128xf32> to vector<16x128xf32>
    %c0_10 = arith.constant 0 : index
    %c0_11 = arith.constant 0 : index
    %26 = vector.load %arg9[%c0_10, %c0_11] : memref<16x640xf32, #tpu.memory_space<vmem>>, vector<16x128xf32>
    tpu.vector_store %arg9[%c0_10, %c0_11], %25 {strides = array<i32>} : memref<16x640xf32, #tpu.memory_space<vmem>>, vector<16x128xf32>,
    %27 = vector.extract_strided_slice %6 {offsets = [0, 128], sizes = [16, 128], strides = [1, 1]} : vector<16x1920xf32> to vector<16x128xf32>
    %28 = vector.shape_cast %27 : vector<16x128xf32> to vector<2x8x128xf32>
    %29 = vector.extract_strided_slice %6 {offsets = [0, 768], sizes = [16, 128], strides = [1, 1]} : vector<16x1920xf32> to vector<16x128xf32>
    %30 = vector.shape_cast %29 : vector<16x128xf32> to vector<2x8x128xf32>
    %31 = vector.extract_strided_slice %6 {offsets = [0, 1408], sizes = [16, 128], strides = [1, 1]} : vector<16x1920xf32> to vector<16x128xf32>
    %32 = vector.shape_cast %31 : vector<16x128xf32> to vector<2x8x128xf32>
    "tpu.trace_start"() <{level = 10 : i32, message = "bqd,bkd->bqk"}> : () -> ()
    %cst_12 = arith.constant dense<0.000000e+00> : vector<2x8x8xf32>
    %33 = tpu.matmul %28, %30, %cst_12 {dimension_numbers = #tpu.dot_dimension_numbers<[2], [2], [1], [1], [0, 0, 0, 1, 1, 1], [0], [0]>} : vector<2x8x128xf32>, vector<2x8x128xf32>, vector<2x8x8xf32> -> vector<2x8x8xf32>
    "tpu.trace_stop"() : () -> ()
    %cst_13 = arith.constant dense<0xFF800000> : vector<2x8xf32>
    %34 = vector.multi_reduction <maximumf>, %33, %cst_13 [2] : vector<2x8x8xf32> to vector<2x8xf32>
    %35 = vector.shape_cast %34 : vector<2x8xf32> to vector<2x8x1xf32>
    %36 = vector.broadcast %35 : vector<2x8x1xf32> to vector<2x8x8xf32>
    %37 = arith.subf %33, %36 : vector<2x8x8xf32>
    %38 = math.exp %37 : vector<2x8x8xf32>
    %cst_14 = arith.constant dense<0.000000e+00> : vector<2x8xf32>
    %39 = vector.multi_reduction <add>, %38, %cst_14 [2] : vector<2x8x8xf32> to vector<2x8xf32>
    %40 = vector.shape_cast %39 : vector<2x8xf32> to vector<2x8x1xf32>
    %41 = tpu.reciprocal %40 {approx = true} : vector<2x8x1xf32> -> vector<2x8x1xf32>
    %42 = vector.broadcast %41 : vector<2x8x1xf32> to vector<2x8x8xf32>
    %43 = arith.mulf %38, %42 : vector<2x8x8xf32>
    "tpu.trace_start"() <{level = 10 : i32, message = "bqk,bkd->bqd"}> : () -> ()
    %cst_15 = arith.constant dense<0.000000e+00> : vector<2x8x128xf32>
    %44 = tpu.matmul %43, %32, %cst_15 {dimension_numbers = #tpu.dot_dimension_numbers<[2], [1], [1], [2], [0, 0, 0, 1, 1, 2], [0], [0]>} : vector<2x8x8xf32>, vector<2x8x128xf32>, vector<2x8x128xf32> -> vector<2x8x128xf32>
    "tpu.trace_stop"() : () -> ()
    %45 = vector.shape_cast %44 : vector<2x8x128xf32> to vector<16x128xf32>
    %c0_16 = arith.constant 0 : index
    %c128 = arith.constant 128 : index
    %46 = vector.load %arg9[%c0_16, %c128] : memref<16x640xf32, #tpu.memory_space<vmem>>, vector<16x128xf32>
    tpu.vector_store %arg9[%c0_16, %c128], %45 {strides = array<i32>} : memref<16x640xf32, #tpu.memory_space<vmem>>, vector<16x128xf32>,
    %47 = vector.extract_strided_slice %6 {offsets = [0, 256], sizes = [16, 128], strides = [1, 1]} : vector<16x1920xf32> to vector<16x128xf32>
    %48 = vector.shape_cast %47 : vector<16x128xf32> to vector<2x8x128xf32>
    %49 = vector.extract_strided_slice %6 {offsets = [0, 896], sizes = [16, 128], strides = [1, 1]} : vector<16x1920xf32> to vector<16x128xf32>
    %50 = vector.shape_cast %49 : vector<16x128xf32> to vector<2x8x128xf32>
    %51 = vector.extract_strided_slice %6 {offsets = [0, 1536], sizes = [16, 128], strides = [1, 1]} : vector<16x1920xf32> to vector<16x128xf32>
    %52 = vector.shape_cast %51 : vector<16x128xf32> to vector<2x8x128xf32>
    "tpu.trace_start"() <{level = 10 : i32, message = "bqd,bkd->bqk"}> : () -> ()
    %cst_17 = arith.constant dense<0.000000e+00> : vector<2x8x8xf32>
    %53 = tpu.matmul %48, %50, %cst_17 {dimension_numbers = #tpu.dot_dimension_numbers<[2], [2], [1], [1], [0, 0, 0, 1, 1, 1], [0], [0]>} : vector<2x8x128xf32>, vector<2x8x128xf32>, vector<2x8x8xf32> -> vector<2x8x8xf32>
    "tpu.trace_stop"() : () -> ()
    %cst_18 = arith.constant dense<0xFF800000> : vector<2x8xf32>
    %54 = vector.multi_reduction <maximumf>, %53, %cst_18 [2] : vector<2x8x8xf32> to vector<2x8xf32>
    %55 = vector.shape_cast %54 : vector<2x8xf32> to vector<2x8x1xf32>
    %56 = vector.broadcast %55 : vector<2x8x1xf32> to vector<2x8x8xf32>
    %57 = arith.subf %53, %56 : vector<2x8x8xf32>
    %58 = math.exp %57 : vector<2x8x8xf32>
    %cst_19 = arith.constant dense<0.000000e+00> : vector<2x8xf32>
    %59 = vector.multi_reduction <add>, %58, %cst_19 [2] : vector<2x8x8xf32> to vector<2x8xf32>
    %60 = vector.shape_cast %59 : vector<2x8xf32> to vector<2x8x1xf32>
    %61 = tpu.reciprocal %60 {approx = true} : vector<2x8x1xf32> -> vector<2x8x1xf32>
    %62 = vector.broadcast %61 : vector<2x8x1xf32> to vector<2x8x8xf32>
    %63 = arith.mulf %58, %62 : vector<2x8x8xf32>
    "tpu.trace_start"() <{level = 10 : i32, message = "bqk,bkd->bqd"}> : () -> ()
    %cst_20 = arith.constant dense<0.000000e+00> : vector<2x8x128xf32>
    %64 = tpu.matmul %63, %52, %cst_20 {dimension_numbers = #tpu.dot_dimension_numbers<[2], [1], [1], [2], [0, 0, 0, 1, 1, 2], [0], [0]>} : vector<2x8x8xf32>, vector<2x8x128xf32>, vector<2x8x128xf32> -> vector<2x8x128xf32>
    "tpu.trace_stop"() : () -> ()
    %65 = vector.shape_cast %64 : vector<2x8x128xf32> to vector<16x128xf32>
    %c0_21 = arith.constant 0 : index
    %c256 = arith.constant 256 : index
    %66 = vector.load %arg9[%c0_21, %c256] : memref<16x640xf32, #tpu.memory_space<vmem>>, vector<16x128xf32>
    tpu.vector_store %arg9[%c0_21, %c256], %65 {strides = array<i32>} : memref<16x640xf32, #tpu.memory_space<vmem>>, vector<16x128xf32>,
    %67 = vector.extract_strided_slice %6 {offsets = [0, 384], sizes = [16, 128], strides = [1, 1]} : vector<16x1920xf32> to vector<16x128xf32>
    %68 = vector.shape_cast %67 : vector<16x128xf32> to vector<2x8x128xf32>
    %69 = vector.extract_strided_slice %6 {offsets = [0, 1024], sizes = [16, 128], strides = [1, 1]} : vector<16x1920xf32> to vector<16x128xf32>
    %70 = vector.shape_cast %69 : vector<16x128xf32> to vector<2x8x128xf32>
    %71 = vector.extract_strided_slice %6 {offsets = [0, 1664], sizes = [16, 128], strides = [1, 1]} : vector<16x1920xf32> to vector<16x128xf32>
    %72 = vector.shape_cast %71 : vector<16x128xf32> to vector<2x8x128xf32>
    "tpu.trace_start"() <{level = 10 : i32, message = "bqd,bkd->bqk"}> : () -> ()
    %cst_22 = arith.constant dense<0.000000e+00> : vector<2x8x8xf32>
    %73 = tpu.matmul %68, %70, %cst_22 {dimension_numbers = #tpu.dot_dimension_numbers<[2], [2], [1], [1], [0, 0, 0, 1, 1, 1], [0], [0]>} : vector<2x8x128xf32>, vector<2x8x128xf32>, vector<2x8x8xf32> -> vector<2x8x8xf32>
    "tpu.trace_stop"() : () -> ()
    %cst_23 = arith.constant dense<0xFF800000> : vector<2x8xf32>
    %74 = vector.multi_reduction <maximumf>, %73, %cst_23 [2] : vector<2x8x8xf32> to vector<2x8xf32>
    %75 = vector.shape_cast %74 : vector<2x8xf32> to vector<2x8x1xf32>
    %76 = vector.broadcast %75 : vector<2x8x1xf32> to vector<2x8x8xf32>
    %77 = arith.subf %73, %76 : vector<2x8x8xf32>
    %78 = math.exp %77 : vector<2x8x8xf32>
    %cst_24 = arith.constant dense<0.000000e+00> : vector<2x8xf32>
    %79 = vector.multi_reduction <add>, %78, %cst_24 [2] : vector<2x8x8xf32> to vector<2x8xf32>
    %80 = vector.shape_cast %79 : vector<2x8xf32> to vector<2x8x1xf32>
    %81 = tpu.reciprocal %80 {approx = true} : vector<2x8x1xf32> -> vector<2x8x1xf32>
    %82 = vector.broadcast %81 : vector<2x8x1xf32> to vector<2x8x8xf32>
    %83 = arith.mulf %78, %82 : vector<2x8x8xf32>
    "tpu.trace_start"() <{level = 10 : i32, message = "bqk,bkd->bqd"}> : () -> ()
    %cst_25 = arith.constant dense<0.000000e+00> : vector<2x8x128xf32>
    %84 = tpu.matmul %83, %72, %cst_25 {dimension_numbers = #tpu.dot_dimension_numbers<[2], [1], [1], [2], [0, 0, 0, 1, 1, 2], [0], [0]>} : vector<2x8x8xf32>, vector<2x8x128xf32>, vector<2x8x128xf32> -> vector<2x8x128xf32>
    "tpu.trace_stop"() : () -> ()
    %85 = vector.shape_cast %84 : vector<2x8x128xf32> to vector<16x128xf32>
    %c0_26 = arith.constant 0 : index
    %c384 = arith.constant 384 : index
    %86 = vector.load %arg9[%c0_26, %c384] : memref<16x640xf32, #tpu.memory_space<vmem>>, vector<16x128xf32>
    tpu.vector_store %arg9[%c0_26, %c384], %85 {strides = array<i32>} : memref<16x640xf32, #tpu.memory_space<vmem>>, vector<16x128xf32>,
    %87 = vector.extract_strided_slice %6 {offsets = [0, 512], sizes = [16, 128], strides = [1, 1]} : vector<16x1920xf32> to vector<16x128xf32>
    %88 = vector.shape_cast %87 : vector<16x128xf32> to vector<2x8x128xf32>
    %89 = vector.extract_strided_slice %6 {offsets = [0, 1152], sizes = [16, 128], strides = [1, 1]} : vector<16x1920xf32> to vector<16x128xf32>
    %90 = vector.shape_cast %89 : vector<16x128xf32> to vector<2x8x128xf32>
    %91 = vector.extract_strided_slice %6 {offsets = [0, 1792], sizes = [16, 128], strides = [1, 1]} : vector<16x1920xf32> to vector<16x128xf32>
    %92 = vector.shape_cast %91 : vector<16x128xf32> to vector<2x8x128xf32>
    "tpu.trace_start"() <{level = 10 : i32, message = "bqd,bkd->bqk"}> : () -> ()
    %cst_27 = arith.constant dense<0.000000e+00> : vector<2x8x8xf32>
    %93 = tpu.matmul %88, %90, %cst_27 {dimension_numbers = #tpu.dot_dimension_numbers<[2], [2], [1], [1], [0, 0, 0, 1, 1, 1], [0], [0]>} : vector<2x8x128xf32>, vector<2x8x128xf32>, vector<2x8x8xf32> -> vector<2x8x8xf32>
    "tpu.trace_stop"() : () -> ()
    %cst_28 = arith.constant dense<0xFF800000> : vector<2x8xf32>
    %94 = vector.multi_reduction <maximumf>, %93, %cst_28 [2] : vector<2x8x8xf32> to vector<2x8xf32>
    %95 = vector.shape_cast %94 : vector<2x8xf32> to vector<2x8x1xf32>
    %96 = vector.broadcast %95 : vector<2x8x1xf32> to vector<2x8x8xf32>
    %97 = arith.subf %93, %96 : vector<2x8x8xf32>
    %98 = math.exp %97 : vector<2x8x8xf32>
    %cst_29 = arith.constant dense<0.000000e+00> : vector<2x8xf32>
    %99 = vector.multi_reduction <add>, %98, %cst_29 [2] : vector<2x8x8xf32> to vector<2x8xf32>
    %100 = vector.shape_cast %99 : vector<2x8xf32> to vector<2x8x1xf32>
    %101 = tpu.reciprocal %100 {approx = true} : vector<2x8x1xf32> -> vector<2x8x1xf32>
    %102 = vector.broadcast %101 : vector<2x8x1xf32> to vector<2x8x8xf32>
    %103 = arith.mulf %98, %102 : vector<2x8x8xf32>
    "tpu.trace_start"() <{level = 10 : i32, message = "bqk,bkd->bqd"}> : () -> ()
    %cst_30 = arith.constant dense<0.000000e+00> : vector<2x8x128xf32>
    %104 = tpu.matmul %103, %92, %cst_30 {dimension_numbers = #tpu.dot_dimension_numbers<[2], [1], [1], [2], [0, 0, 0, 1, 1, 2], [0], [0]>} : vector<2x8x8xf32>, vector<2x8x128xf32>, vector<2x8x128xf32> -> vector<2x8x128xf32>
    "tpu.trace_stop"() : () -> ()
    %105 = vector.shape_cast %104 : vector<2x8x128xf32> to vector<16x128xf32>
    %c0_31 = arith.constant 0 : index
    %c512 = arith.constant 512 : index
    %106 = vector.load %arg9[%c0_31, %c512] : memref<16x640xf32, #tpu.memory_space<vmem>>, vector<16x128xf32>
    tpu.vector_store %arg9[%c0_31, %c512], %105 {strides = array<i32>} : memref<16x640xf32, #tpu.memory_space<vmem>>, vector<16x128xf32>,
    %c0_32 = arith.constant 0 : index
    %c0_33 = arith.constant 0 : index
    %107 = vector.load %arg9[%c0_32, %c0_33] : memref<16x640xf32, #tpu.memory_space<vmem>>, vector<16x640xf32>
    %c0_34 = arith.constant 0 : index
    %c0_35 = arith.constant 0 : index
    %108 = vector.load %arg4[%c0_34, %c0_35] : memref<640x128xf32, #tpu.memory_space<vmem>>, vector<640x128xf32>
    %cst_36 = arith.constant dense<0.000000e+00> : vector<16x128xf32>
    %109 = tpu.matmul %107, %108, %cst_36 {dimension_numbers = #tpu.dot_dimension_numbers<[1], [0], [0], [1], [0, 0, 1, 1], [], []>} : vector<16x640xf32>, vector<640x128xf32>, vector<16x128xf32> -> vector<16x128xf32>
    %110 = arith.addf %1, %109 : vector<16x128xf32>
    %c0_37 = arith.constant 0 : index
    %c0_38 = arith.constant 0 : index
    %111 = vector.load %arg5[%c0_37, %c0_38] : memref<1x128xf32, #tpu.memory_space<vmem>>, vector<1x128xf32>
    %112 = vector.broadcast %111 : vector<1x128xf32> to vector<16x128xf32>
    %113 = arith.addf %110, %112 : vector<16x128xf32>
    %cst_39 = arith.constant dense<0.000000e+00> : vector<16xf32>
    %114 = vector.multi_reduction <add>, %113, %cst_39 [1] : vector<16x128xf32> to vector<16xf32>
    %115 = vector.shape_cast %114 : vector<16xf32> to vector<16x1xf32>
    %cst_40 = arith.constant 0.0333333351 : f32
    %116 = vector.broadcast %cst_40 : f32 to vector<16x1xf32>
    %117 = arith.mulf %115, %116 : vector<16x1xf32>
    %118 = arith.mulf %113, %113 : vector<16x128xf32>
    %cst_41 = arith.constant dense<0.000000e+00> : vector<16xf32>
    %119 = vector.multi_reduction <add>, %118, %cst_41 [1] : vector<16x128xf32> to vector<16xf32>
    %120 = vector.shape_cast %119 : vector<16xf32> to vector<16x1xf32>
    %cst_42 = arith.constant 0.0333333351 : f32
    %121 = vector.broadcast %cst_42 : f32 to vector<16x1xf32>
    %122 = arith.mulf %120, %121 : vector<16x1xf32>
    %123 = arith.mulf %117, %117 : vector<16x1xf32>
    %124 = arith.subf %122, %123 : vector<16x1xf32>
    %125 = vector.broadcast %117 : vector<16x1xf32> to vector<16x128xf32>
    %126 = arith.subf %113, %125 : vector<16x128xf32>
    %cst_43 = arith.constant 9.99999974E-6 : f32
    %127 = vector.broadcast %cst_43 : f32 to vector<16x1xf32>
    %128 = arith.addf %124, %127 : vector<16x1xf32>
    %129 = math.rsqrt %128 : vector<16x1xf32>
    %130 = vector.broadcast %129 : vector<16x1xf32> to vector<16x128xf32>
    %131 = arith.mulf %126, %130 : vector<16x128xf32>
    %c0_44 = arith.constant 0 : index
    %c0_45 = arith.constant 0 : index
    %132 = vector.load %arg6[%c0_44, %c0_45] : memref<1x128xf32, #tpu.memory_space<vmem>>, vector<1x128xf32>
    %133 = vector.broadcast %132 : vector<1x128xf32> to vector<16x128xf32>
    %134 = arith.mulf %131, %133 : vector<16x128xf32>
    %c0_46 = arith.constant 0 : index
    %c0_47 = arith.constant 0 : index
    %135 = vector.load %arg7[%c0_46, %c0_47] : memref<1x128xf32, #tpu.memory_space<vmem>>, vector<1x128xf32>
    %136 = vector.broadcast %135 : vector<1x128xf32> to vector<16x128xf32>
    %137 = arith.addf %134, %136 : vector<16x128xf32>
    %138 = vector.shape_cast %137 : vector<16x128xf32> to vector<2x8x128xf32>
    %c0_48 = arith.constant 0 : index
    %c0_49 = arith.constant 0 : index
    %c0_50 = arith.constant 0 : index
    %139 = vector.load %arg8[%c0_48, %c0_49, %c0_50] : memref<2x8x128xf32, #tpu.memory_space<vmem>>, vector<2x8x128xf32>
    tpu.vector_store %arg8[%c0_48, %c0_49, %c0_50], %138 {strides = array<i32>} : memref<2x8x128xf32, #tpu.memory_space<vmem>>, vector<2x8x128xf32>,
    return
  }
  func.func @transform_0(%arg0: i32) -> (i32, i32, i32) {
    %c0_i32 = arith.constant 0 : i32
    %c0_i32_0 = arith.constant 0 : i32
    %c0_i32_1 = arith.constant 0 : i32
    return %arg0, %c0_i32, %c0_i32_0 : i32, i32, i32
  }
  func.func @transform_1(%arg0: i32) -> (i32, i32) {
    %c0_i32 = arith.constant 0 : i32
    %c0_i32_0 = arith.constant 0 : i32
    %c0_i32_1 = arith.constant 0 : i32
    return %c0_i32, %c0_i32_0 : i32, i32
  }
  func.func @transform_2(%arg0: i32) -> (i32, i32) {
    %c0_i32 = arith.constant 0 : i32
    %c0_i32_0 = arith.constant 0 : i32
    %c0_i32_1 = arith.constant 0 : i32
    return %c0_i32, %c0_i32_0 : i32, i32
  }
  func.func @transform_3(%arg0: i32) -> (i32, i32) {
    %c0_i32 = arith.constant 0 : i32
    %c0_i32_0 = arith.constant 0 : i32
    %c0_i32_1 = arith.constant 0 : i32
    return %c0_i32, %c0_i32_0 : i32, i32
  }
  func.func @transform_4(%arg0: i32) -> (i32, i32) {
    %c0_i32 = arith.constant 0 : i32
    %c0_i32_0 = arith.constant 0 : i32
    %c0_i32_1 = arith.constant 0 : i32
    return %c0_i32, %c0_i32_0 : i32, i32
  }
  func.func @transform_5(%arg0: i32) -> (i32, i32) {
    %c0_i32 = arith.constant 0 : i32
    %c0_i32_0 = arith.constant 0 : i32
    %c0_i32_1 = arith.constant 0 : i32
    return %c0_i32, %c0_i32_0 : i32, i32
  }
  func.func @transform_6(%arg0: i32) -> (i32, i32) {
    %c0_i32 = arith.constant 0 : i32
    %c0_i32_0 = arith.constant 0 : i32
    %c0_i32_1 = arith.constant 0 : i32
    return %c0_i32, %c0_i32_0 : i32, i32
  }
  func.func @transform_7(%arg0: i32) -> (i32, i32, i32) {
    %c0_i32 = arith.constant 0 : i32
    %c0_i32_0 = arith.constant 0 : i32
    %c0_i32_1 = arith.constant 0 : i32
    return %arg0, %c0_i32, %c0_i32_0 : i32, i32, i32
  }
}

</mosaic_0001>

<llo_original>
// kernel: tpu_custom_call.1
$region0: #{tpu_custom_call.1}
  #allocation0 [shape = 'u32[]', space=smem, size = 0x4, offset = 0x4, fixed_abs, tag = 'smem constant byte address 0x4 - core index']
  #allocation1 [shape = 'u32[72,128]{1,0:T(1,128)}', space=vmem, size = 0x9000, scoped, tag = 'internal scratch']
  #allocation2 [shape = 'f32[16,640]{1,0:T(8,128)}', space=vmem, size = 0xa000, scoped, tag = 'scratch operand']
  %s0 = inlined_call_operand.hbm [shape: f32[2,8,128], index: 0, kind: input, shape index: {}]
  %s1 = inlined_call_operand.hbm [shape: f32[128,1920], index: 1, kind: input, shape index: {}]
  %s2 = inlined_call_operand.hbm [shape: f32[1,1920], index: 2, kind: input, shape index: {}]
  %s3 = inlined_call_operand.hbm [shape: f32[640,128], index: 3, kind: input, shape index: {}]
  %s4 = inlined_call_operand.vmem [shape: f32[1,128], index: 4, kind: input, shape index: {}]
  %s5 = inlined_call_operand.vmem [shape: f32[1,128], index: 5, kind: input, shape index: {}]
  %s6 = inlined_call_operand.vmem [shape: f32[1,128], index: 6, kind: input, shape index: {}]
  %s7 = inlined_call_operand.hbm [shape: f32[2,8,128], index: 7, kind: output, shape index: {}]
  %s8 = sld [smem:[#allocation0]]
  $region54: #{tpu_custom_call.1} parent=0
    _
  %s10 = ssub.s32 1, %s8
  %s11 = scalar_select 0, %s10, %s8
  $region1: #{tpu_custom_call.1} parent=0
    #allocation3 [shape = 'u8[8192]{0}', space=vmem, size = 0x2000, scoped, tag = 'input window, operand 0, single buffered']
    #allocation4 [shape = 's32[1]{0}', space=sflag, size = 0x4, scoped, tag = 'scoped memory for tpu_custom_call.1']
    #allocation5 [shape = 's32[1]{0}', space=sflag, size = 0x4, scoped, tag = 'scoped memory for tpu_custom_call.1']
    #allocation6 [shape = 'u8[983040]{0}', space=vmem, size = 0xf0000, scoped, tag = 'input window, operand 1, single buffered']
    #allocation7 [shape = 's32[1]{0}', space=sflag, size = 0x4, scoped, tag = 'scoped memory for tpu_custom_call.1']
    #allocation8 [shape = 'u8[7680]{0}', space=vmem, size = 0x2000, scoped, tag = 'input window, operand 2, single buffered']
    #allocation9 [shape = 'u8[327680]{0}', space=vmem, size = 0x50000, scoped, tag = 'input window, operand 3, single buffered']
    #allocation10 [shape = 's32[1]{0}', space=sflag, size = 0x4, scoped, tag = 'scoped memory for tpu_custom_call.1']
    #allocation11 [shape = 'u8[8192]{0}', space=vmem, size = 0x2000, scoped, tag = 'output window, operand 0, single buffered']
    %12 = vsyncpa [#allocation4], 0
    %13 = vsyncpa [#allocation7], 0
    %14 = vsyncpa [#allocation10], 0
    %15 = vsyncpa [#allocation5], 0
    // Predicated region
    $region2: #{tpu_custom_call.1} parent=1 // pred_check
      _
    $region3: #{tpu_custom_call.1} parent=1 // pred_check_branch
      %17 = sbr.rel (0) target = $region5
    $region4: #{tpu_custom_call.1} parent=1 // pred_region
      %19 = vsyncadd [#allocation4], 0
      %s20 = sshll.u32 %s0, 4
      %s21 = int_to_ptr.hbm [resolvable:$true] %s20
      %s22 = sshll.u32 [#allocation3], 4
      %s23 = int_to_ptr.vmem [resolvable:$true] %s22
      %28 = dma.hbm_to_vmem [thread:$0]  %s21, 256, %s23, [#allocation4], 128, 128, 8
    $region5: #{tpu_custom_call.1} parent=1 // pred_fallthru
      _
    // Predicated region
    $region6: #{tpu_custom_call.1} parent=1 // pred_check
      _
    $region7: #{tpu_custom_call.1} parent=1 // pred_check_branch
      %30 = sbr.rel (0) target = $region9
    $region8: #{tpu_custom_call.1} parent=1 // pred_region
      %32 = vsyncadd [#allocation7], 0
      %s33 = sshll.u32 %s1, 4
      %s34 = int_to_ptr.hbm [resolvable:$true] %s33
      %s35 = sshll.u32 [#allocation6], 4
      %s36 = int_to_ptr.vmem [resolvable:$true] %s35
      %41 = dma.hbm_to_vmem [thread:$0]  %s34, 30720, %s36, [#allocation7], 1920, 1920, 120
    $region9: #{tpu_custom_call.1} parent=1 // pred_fallthru
      _
    // Predicated region
    $region10: #{tpu_custom_call.1} parent=1 // pred_check
      _
    $region11: #{tpu_custom_call.1} parent=1 // pred_check_branch
      %43 = sbr.rel (0) target = $region13
    $region12: #{tpu_custom_call.1} parent=1 // pred_region
      %45 = vsyncadd [#allocation7], 0
      %s47 = sshll.u32 %s2, 4
      %s48 = int_to_ptr.hbm [resolvable:$true] %s47
      %s49 = sshll.u32 [#allocation8], 4
      %s50 = int_to_ptr.vmem [resolvable:$true] %s49
      %52 = dma.hbm_to_vmem [thread:$0]  %s48, 240, %s50, [#allocation7]
    $region13: #{tpu_custom_call.1} parent=1 // pred_fallthru
      _
    // Predicated region
    $region14: #{tpu_custom_call.1} parent=1 // pred_check
      _
    $region15: #{tpu_custom_call.1} parent=1 // pred_check_branch
      %54 = sbr.rel (0) target = $region17
    $region16: #{tpu_custom_call.1} parent=1 // pred_region
      %56 = vsyncadd [#allocation10], 0
      %s57 = sshll.u32 %s3, 4
      %s58 = int_to_ptr.hbm [resolvable:$true] %s57
      %s59 = sshll.u32 [#allocation9], 4
      %s60 = int_to_ptr.vmem [resolvable:$true] %s59
      %65 = dma.hbm_to_vmem [thread:$0]  %s58, 10240, %s60, [#allocation10], 128, 128, 8
    $region17: #{tpu_custom_call.1} parent=1 // pred_fallthru
      _
    // Predicated region
    $region18: #{tpu_custom_call.1} parent=1 // pred_check
      _
    $region19: #{tpu_custom_call.1} parent=1 // pred_check_branch
      %67 = sbr.rel (0) target = $region21
    $region20: #{tpu_custom_call.1} parent=1 // pred_region
      _
    $region21: #{tpu_custom_call.1} parent=1 // pred_fallthru
      _
    // Predicated region
    $region22: #{tpu_custom_call.1} parent=1 // pred_check
      _
    $region23: #{tpu_custom_call.1} parent=1 // pred_check_branch
      %69 = sbr.rel (0) target = $region25
    $region24: #{tpu_custom_call.1} parent=1 // pred_region
      _
    $region25: #{tpu_custom_call.1} parent=1 // pred_fallthru
      _
    // Predicated region
    $region26: #{tpu_custom_call.1} parent=1 // pred_check
      _
    $region27: #{tpu_custom_call.1} parent=1 // pred_check_branch
      %71 = sbr.rel (0) target = $region29
    $region28: #{tpu_custom_call.1} parent=1 // pred_region
      _
    $region29: #{tpu_custom_call.1} parent=1 // pred_fallthru
      _
    // Predicated region
    $region30: #{tpu_custom_call.1} parent=1 // pred_check
      _
    $region31: #{tpu_custom_call.1} parent=1 // pred_check_branch
      %73 = sbr.rel (0) target = $region33
    $region32: #{tpu_custom_call.1} parent=1 // pred_region
      %75 = dma.done [#allocation4], 256
    $region33: #{tpu_custom_call.1} parent=1 // pred_fallthru
      _
    // Predicated region
    $region34: #{tpu_custom_call.1} parent=1 // pred_check
      _
    $region35: #{tpu_custom_call.1} parent=1 // pred_check_branch
      %77 = sbr.rel (0) target = $region37
    $region36: #{tpu_custom_call.1} parent=1 // pred_region
      %79 = dma.done [#allocation7], 30720
    $region37: #{tpu_custom_call.1} parent=1 // pred_fallthru
      _
    // Predicated region
    $region38: #{tpu_custom_call.1} parent=1 // pred_check
      _
    $region39: #{tpu_custom_call.1} parent=1 // pred_check_branch
      %81 = sbr.rel (0) target = $region41
    $region40: #{tpu_custom_call.1} parent=1 // pred_region
      %83 = dma.done [#allocation7], 240
    $region41: #{tpu_custom_call.1} parent=1 // pred_fallthru
      _
    // Predicated region
    $region42: #{tpu_custom_call.1} parent=1 // pred_check
      _
    $region43: #{tpu_custom_call.1} parent=1 // pred_check_branch
      %85 = sbr.rel (0) target = $region45
    $region44: #{tpu_custom_call.1} parent=1 // pred_region
      %87 = dma.done [#allocation10], 10240
    $region45: #{tpu_custom_call.1} parent=1 // pred_fallthru
      _
    %v88 = vld [vmem:[#allocation3] sm:$0xff]
    %v89 = vld [vmem:[#allocation3 + $0x8] sm:$0xff]
    %v90 = vld [vmem:[#allocation6] sm:$0xff]
    %v91 = vld [vmem:[#allocation6 + $0x8] sm:$0xff]
    %v92 = vld [vmem:[#allocation6 + $0x10] sm:$0xff]
    %v93 = vld [vmem:[#allocation6 + $0x18] sm:$0xff]
    %v94 = vld [vmem:[#allocation6 + $0x20] sm:$0xff]
    %v95 = vld [vmem:[#allocation6 + $0x28] sm:$0xff]
    %v96 = vld [vmem:[#allocation6 + $0x30] sm:$0xff]
    %v97 = vld [vmem:[#allocation6 + $0x38] sm:$0xff]
    %v98 = vld [vmem:[#allocation6 + $0x40] sm:$0xff]
    %v99 = vld [vmem:[#allocation6 + $0x48] sm:$0xff]
    %v100 = vld [vmem:[#allocation6 + $0x50] sm:$0xff]
    %v101 = vld [vmem:[#allocation6 + $0x58] sm:$0xff]
    %v102 = vld [vmem:[#allocation6 + $0x60] sm:$0xff]
    %v103 = vld [vmem:[#allocation6 + $0x68] sm:$0xff]
    %v104 = vld [vmem:[#allocation6 + $0x70] sm:$0xff]
    %v105 = vld [vmem:[#allocation6 + $0x78] sm:$0xff]
    %v106 = vld [vmem:[#allocation6 + $0x80] sm:$0xff]
    %v107 = vld [vmem:[#allocation6 + $0x88] sm:$0xff]
    %v108 = vld [vmem:[#allocation6 + $0x90] sm:$0xff]
    %v109 = vld [vmem:[#allocation6 + $0x98] sm:$0xff]
    %v110 = vld [vmem:[#allocation6 + $0xa0] sm:$0xff]
    %v111 = vld [vmem:[#allocation6 + $0xa8] sm:$0xff]
    %v112 = vld [vmem:[#allocation6 + $0xb0] sm:$0xff]
    %v113 = vld [vmem:[#allocation6 + $0xb8] sm:$0xff]
    %v114 = vld [vmem:[#allocation6 + $0xc0] sm:$0xff]
    %v115 = vld [vmem:[#allocation6 + $0xc8] sm:$0xff]
    %v116 = vld [vmem:[#allocation6 + $0xd0] sm:$0xff]
    %v117 = vld [vmem:[#allocation6 + $0xd8] sm:$0xff]
    %v118 = vld [vmem:[#allocation6 + $0xe0] sm:$0xff]
    %v119 = vld [vmem:[#allocation6 + $0xe8] sm:$0xff]
    %v120 = vld [vmem:[#allocation6 + $0xf0] sm:$0xff]
    %v121 = vld [vmem:[#allocation6 + $0xf8] sm:$0xff]
    %v122 = vld [vmem:[#allocation6 + $0x100] sm:$0xff]
    %v123 = vld [vmem:[#allocation6 + $0x108] sm:$0xff]
    %v124 = vld [vmem:[#allocation6 + $0x110] sm:$0xff]
    %v125 = vld [vmem:[#allocation6 + $0x118] sm:$0xff]
    %v126 = vld [vmem:[#allocation6 + $0x120] sm:$0xff]
    %v127 = vld [vmem:[#allocation6 + $0x128] sm:$0xff]
    %v128 = vld [vmem:[#allocation6 + $0x130] sm:$0xff]
    %v129 = vld [vmem:[#allocation6 + $0x138] sm:$0xff]
    %v130 = vld [vmem:[#allocation6 + $0x140] sm:$0xff]
    %v131 = vld [vmem:[#allocation6 + $0x148] sm:$0xff]
    %v132 = vld [vmem:[#allocation6 + $0x150] sm:$0xff]
    %v133 = vld [vmem:[#allocation6 + $0x158] sm:$0xff]
    %v134 = vld [vmem:[#allocation6 + $0x160] sm:$0xff]
    %v135 = vld [vmem:[#allocation6 + $0x168] sm:$0xff]
    %v136 = vld [vmem:[#allocation6 + $0x170] sm:$0xff]
    %v137 = vld [vmem:[#allocation6 + $0x178] sm:$0xff]
    %v138 = vld [vmem:[#allocation6 + $0x180] sm:$0xff]
    %v139 = vld [vmem:[#allocation6 + $0x188] sm:$0xff]
    %v140 = vld [vmem:[#allocation6 + $0x190] sm:$0xff]
    %v141 = vld [vmem:[#allocation6 + $0x198] sm:$0xff]
    %v142 = vld [vmem:[#allocation6 + $0x1a0] sm:$0xff]
    %v143 = vld [vmem:[#allocation6 + $0x1a8] sm:$0xff]
    %v144 = vld [vmem:[#allocation6 + $0x1b0] sm:$0xff]
    %v145 = vld [vmem:[#allocation6 + $0x1b8] sm:$0xff]
    %v146 = vld [vmem:[#allocation6 + $0x1c0] sm:$0xff]
    %v147 = vld [vmem:[#allocation6 + $0x1c8] sm:$0xff]
    %v148 = vld [vmem:[#allocation6 + $0x1d0] sm:$0xff]
    %v149 = vld [vmem:[#allocation6 + $0x1d8] sm:$0xff]
    %v150 = vld [vmem:[#allocation6 + $0x1e0] sm:$0xff]
    %v151 = vld [vmem:[#allocation6 + $0x1e8] sm:$0xff]
    %v152 = vld [vmem:[#allocation6 + $0x1f0] sm:$0xff]
    %v153 = vld [vmem:[#allocation6 + $0x1f8] sm:$0xff]
    %v154 = vld [vmem:[#allocation6 + $0x200] sm:$0xff]
    %v155 = vld [vmem:[#allocation6 + $0x208] sm:$0xff]
    %v156 = vld [vmem:[#allocation6 + $0x210] sm:$0xff]
    %v157 = vld [vmem:[#allocation6 + $0x218] sm:$0xff]
    %v158 = vld [vmem:[#allocation6 + $0x220] sm:$0xff]
    %v159 = vld [vmem:[#allocation6 + $0x228] sm:$0xff]
    %v160 = vld [vmem:[#allocation6 + $0x230] sm:$0xff]
    %v161 = vld [vmem:[#allocation6 + $0x238] sm:$0xff]
    %v162 = vld [vmem:[#allocation6 + $0x240] sm:$0xff]
    %v163 = vld [vmem:[#allocation6 + $0x248] sm:$0xff]
    %v164 = vld [vmem:[#allocation6 + $0x250] sm:$0xff]
    %v165 = vld [vmem:[#allocation6 + $0x258] sm:$0xff]
    %v166 = vld [vmem:[#allocation6 + $0x260] sm:$0xff]
    %v167 = vld [vmem:[#allocation6 + $0x268] sm:$0xff]
    %v168 = vld [vmem:[#allocation6 + $0x270] sm:$0xff]
    %v169 = vld [vmem:[#allocation6 + $0x278] sm:$0xff]
    %v170 = vld [vmem:[#allocation6 + $0x280] sm:$0xff]
    %v171 = vld [vmem:[#allocation6 + $0x288] sm:$0xff]
    %v172 = vld [vmem:[#allocation6 + $0x290] sm:$0xff]
    %v173 = vld [vmem:[#allocation6 + $0x298] sm:$0xff]
    %v174 = vld [vmem:[#allocation6 + $0x2a0] sm:$0xff]
    %v175 = vld [vmem:[#allocation6 + $0x2a8] sm:$0xff]
    %v176 = vld [vmem:[#allocation6 + $0x2b0] sm:$0xff]
    %v177 = vld [vmem:[#allocation6 + $0x2b8] sm:$0xff]
    %v178 = vld [vmem:[#allocation6 + $0x2c0] sm:$0xff]
    %v179 = vld [vmem:[#allocation6 + $0x2c8] sm:$0xff]
    %v180 = vld [vmem:[#allocation6 + $0x2d0] sm:$0xff]
    %v181 = vld [vmem:[#allocation6 + $0x2d8] sm:$0xff]
    %v182 = vld [vmem:[#allocation6 + $0x2e0] sm:$0xff]
    %v183 = vld [vmem:[#allocation6 + $0x2e8] sm:$0xff]
    %v184 = vld [vmem:[#allocation6 + $0x2f0] sm:$0xff]
    %v185 = vld [vmem:[#allocation6 + $0x2f8] sm:$0xff]
    %v186 = vld [vmem:[#allocation6 + $0x300] sm:$0xff]
    %v187 = vld [vmem:[#allocation6 + $0x308] sm:$0xff]
    %v188 = vld [vmem:[#allocation6 + $0x310] sm:$0xff]
    %v189 = vld [vmem:[#allocation6 + $0x318] sm:$0xff]
    %v190 = vld [vmem:[#allocation6 + $0x320] sm:$0xff]
    %v191 = vld [vmem:[#allocation6 + $0x328] sm:$0xff]
    %v192 = vld [vmem:[#allocation6 + $0x330] sm:$0xff]
    %v193 = vld [vmem:[#allocation6 + $0x338] sm:$0xff]
    %v194 = vld [vmem:[#allocation6 + $0x340] sm:$0xff]
    %v195 = vld [vmem:[#allocation6 + $0x348] sm:$0xff]
    %v196 = vld [vmem:[#allocation6 + $0x350] sm:$0xff]
    %v197 = vld [vmem:[#allocation6 + $0x358] sm:$0xff]
    %v198 = vld [vmem:[#allocation6 + $0x360] sm:$0xff]
    %v199 = vld [vmem:[#allocation6 + $0x368] sm:$0xff]
    %v200 = vld [vmem:[#allocation6 + $0x370] sm:$0xff]
    %v201 = vld [vmem:[#allocation6 + $0x378] sm:$0xff]
    %v202 = vld [vmem:[#allocation6 + $0x380] sm:$0xff]
    %v203 = vld [vmem:[#allocation6 + $0x388] sm:$0xff]
    %v204 = vld [vmem:[#allocation6 + $0x390] sm:$0xff]
    %v205 = vld [vmem:[#allocation6 + $0x398] sm:$0xff]
    %v206 = vld [vmem:[#allocation6 + $0x3a0] sm:$0xff]
    %v207 = vld [vmem:[#allocation6 + $0x3a8] sm:$0xff]
    %v208 = vld [vmem:[#allocation6 + $0x3b0] sm:$0xff]
    %v209 = vld [vmem:[#allocation6 + $0x3b8] sm:$0xff]
    %v210 = vld [vmem:[#allocation6 + $0x3c0] sm:$0xff]
    %v211 = vld [vmem:[#allocation6 + $0x3c8] sm:$0xff]
    %v212 = vld [vmem:[#allocation6 + $0x3d0] sm:$0xff]
    %v213 = vld [vmem:[#allocation6 + $0x3d8] sm:$0xff]
    %v214 = vld [vmem:[#allocation6 + $0x3e0] sm:$0xff]
    %v215 = vld [vmem:[#allocation6 + $0x3e8] sm:$0xff]
    %v216 = vld [vmem:[#allocation6 + $0x3f0] sm:$0xff]
    %v217 = vld [vmem:[#allocation6 + $0x3f8] sm:$0xff]
    %v218 = vld [vmem:[#allocation6 + $0x400] sm:$0xff]
    %v219 = vld [vmem:[#allocation6 + $0x408] sm:$0xff]
    %v220 = vld [vmem:[#allocation6 + $0x410] sm:$0xff]
    %v221 = vld [vmem:[#allocation6 + $0x418] sm:$0xff]
    %v222 = vld [vmem:[#allocation6 + $0x420] sm:$0xff]
    %v223 = vld [vmem:[#allocation6 + $0x428] sm:$0xff]
    %v224 = vld [vmem:[#allocation6 + $0x430] sm:$0xff]
    %v225 = vld [vmem:[#allocation6 + $0x438] sm:$0xff]
    %v226 = vld [vmem:[#allocation6 + $0x440] sm:$0xff]
    %v227 = vld [vmem:[#allocation6 + $0x448] sm:$0xff]
    %v228 = vld [vmem:[#allocation6 + $0x450] sm:$0xff]
    %v229 = vld [vmem:[#allocation6 + $0x458] sm:$0xff]
    %v230 = vld [vmem:[#allocation6 + $0x460] sm:$0xff]
    %v231 = vld [vmem:[#allocation6 + $0x468] sm:$0xff]
    %v232 = vld [vmem:[#allocation6 + $0x470] sm:$0xff]
    %v233 = vld [vmem:[#allocation6 + $0x478] sm:$0xff]
    %v234 = vld [vmem:[#allocation6 + $0x480] sm:$0xff]
    %v235 = vld [vmem:[#allocation6 + $0x488] sm:$0xff]
    %v236 = vld [vmem:[#allocation6 + $0x490] sm:$0xff]
    %v237 = vld [vmem:[#allocation6 + $0x498] sm:$0xff]
    %v238 = vld [vmem:[#allocation6 + $0x4a0] sm:$0xff]
    %v239 = vld [vmem:[#allocation6 + $0x4a8] sm:$0xff]
    %v240 = vld [vmem:[#allocation6 + $0x4b0] sm:$0xff]
    %v241 = vld [vmem:[#allocation6 + $0x4b8] sm:$0xff]
    %v242 = vld [vmem:[#allocation6 + $0x4c0] sm:$0xff]
    %v243 = vld [vmem:[#allocation6 + $0x4c8] sm:$0xff]
    %v244 = vld [vmem:[#allocation6 + $0x4d0] sm:$0xff]
    %v245 = vld [vmem:[#allocation6 + $0x4d8] sm:$0xff]
    %v246 = vld [vmem:[#allocation6 + $0x4e0] sm:$0xff]
    %v247 = vld [vmem:[#allocation6 + $0x4e8] sm:$0xff]
    %v248 = vld [vmem:[#allocation6 + $0x4f0] sm:$0xff]
    %v249 = vld [vmem:[#allocation6 + $0x4f8] sm:$0xff]
    %v250 = vld [vmem:[#allocation6 + $0x500] sm:$0xff]
    %v251 = vld [vmem:[#allocation6 + $0x508] sm:$0xff]
    %v252 = vld [vmem:[#allocation6 + $0x510] sm:$0xff]
    %v253 = vld [vmem:[#allocation6 + $0x518] sm:$0xff]
    %v254 = vld [vmem:[#allocation6 + $0x520] sm:$0xff]
    %v255 = vld [vmem:[#allocation6 + $0x528] sm:$0xff]
    %v256 = vld [vmem:[#allocation6 + $0x530] sm:$0xff]
    %v257 = vld [vmem:[#allocation6 + $0x538] sm:$0xff]
    %v258 = vld [vmem:[#allocation6 + $0x540] sm:$0xff]
    %v259 = vld [vmem:[#allocation6 + $0x548] sm:$0xff]
    %v260 = vld [vmem:[#allocation6 + $0x550] sm:$0xff]
    %v261 = vld [vmem:[#allocation6 + $0x558] sm:$0xff]
    %v262 = vld [vmem:[#allocation6 + $0x560] sm:$0xff]
    %v263 = vld [vmem:[#allocation6 + $0x568] sm:$0xff]
    %v264 = vld [vmem:[#allocation6 + $0x570] sm:$0xff]
    %v265 = vld [vmem:[#allocation6 + $0x578] sm:$0xff]
    %v266 = vld [vmem:[#allocation6 + $0x580] sm:$0xff]
    %v267 = vld [vmem:[#allocation6 + $0x588] sm:$0xff]
    %v268 = vld [vmem:[#allocation6 + $0x590] sm:$0xff]
    %v269 = vld [vmem:[#allocation6 + $0x598] sm:$0xff]
    %v270 = vld [vmem:[#allocation6 + $0x5a0] sm:$0xff]
    %v271 = vld [vmem:[#allocation6 + $0x5a8] sm:$0xff]
    %v272 = vld [vmem:[#allocation6 + $0x5b0] sm:$0xff]
    %v273 = vld [vmem:[#allocation6 + $0x5b8] sm:$0xff]
    %v274 = vld [vmem:[#allocation6 + $0x5c0] sm:$0xff]
    %v275 = vld [vmem:[#allocation6 + $0x5c8] sm:$0xff]
    %v276 = vld [vmem:[#allocation6 + $0x5d0] sm:$0xff]
    %v277 = vld [vmem:[#allocation6 + $0x5d8] sm:$0xff]
    %v278 = vld [vmem:[#allocation6 + $0x5e0] sm:$0xff]
    %v279 = vld [vmem:[#allocation6 + $0x5e8] sm:$0xff]
    %v280 = vld [vmem:[#allocation6 + $0x5f0] sm:$0xff]
    %v281 = vld [vmem:[#allocation6 + $0x5f8] sm:$0xff]
    %v282 = vld [vmem:[#allocation6 + $0x600] sm:$0xff]
    %v283 = vld [vmem:[#allocation6 + $0x608] sm:$0xff]
    %v284 = vld [vmem:[#allocation6 + $0x610] sm:$0xff]
    %v285 = vld [vmem:[#allocation6 + $0x618] sm:$0xff]
    %v286 = vld [vmem:[#allocation6 + $0x620] sm:$0xff]
    %v287 = vld [vmem:[#allocation6 + $0x628] sm:$0xff]
    %v288 = vld [vmem:[#allocation6 + $0x630] sm:$0xff]
    %v289 = vld [vmem:[#allocation6 + $0x638] sm:$0xff]
    %v290 = vld [vmem:[#allocation6 + $0x640] sm:$0xff]
    %v291 = vld [vmem:[#allocation6 + $0x648] sm:$0xff]
    %v292 = vld [vmem:[#allocation6 + $0x650] sm:$0xff]
    %v293 = vld [vmem:[#allocation6 + $0x658] sm:$0xff]
    %v294 = vld [vmem:[#allocation6 + $0x660] sm:$0xff]
    %v295 = vld [vmem:[#allocation6 + $0x668] sm:$0xff]
    %v296 = vld [vmem:[#allocation6 + $0x670] sm:$0xff]
    %v297 = vld [vmem:[#allocation6 + $0x678] sm:$0xff]
    %v298 = vld [vmem:[#allocation6 + $0x680] sm:$0xff]
    %v299 = vld [vmem:[#allocation6 + $0x688] sm:$0xff]
    %v300 = vld [vmem:[#allocation6 + $0x690] sm:$0xff]
    %v301 = vld [vmem:[#allocation6 + $0x698] sm:$0xff]
    %v302 = vld [vmem:[#allocation6 + $0x6a0] sm:$0xff]
    %v303 = vld [vmem:[#allocation6 + $0x6a8] sm:$0xff]
    %v304 = vld [vmem:[#allocation6 + $0x6b0] sm:$0xff]
    %v305 = vld [vmem:[#allocation6 + $0x6b8] sm:$0xff]
    %v306 = vld [vmem:[#allocation6 + $0x6c0] sm:$0xff]
    %v307 = vld [vmem:[#allocation6 + $0x6c8] sm:$0xff]
    %v308 = vld [vmem:[#allocation6 + $0x6d0] sm:$0xff]
    %v309 = vld [vmem:[#allocation6 + $0x6d8] sm:$0xff]
    %v310 = vld [vmem:[#allocation6 + $0x6e0] sm:$0xff]
    %v311 = vld [vmem:[#allocation6 + $0x6e8] sm:$0xff]
    %v312 = vld [vmem:[#allocation6 + $0x6f0] sm:$0xff]
    %v313 = vld [vmem:[#allocation6 + $0x6f8] sm:$0xff]
    %v314 = vld [vmem:[#allocation6 + $0x700] sm:$0xff]
    %v315 = vld [vmem:[#allocation6 + $0x708] sm:$0xff]
    %v316 = vld [vmem:[#allocation6 + $0x710] sm:$0xff]
    %v317 = vld [vmem:[#allocation6 + $0x718] sm:$0xff]
    %v318 = vld [vmem:[#allocation6 + $0x720] sm:$0xff]
    %v319 = vld [vmem:[#allocation6 + $0x728] sm:$0xff]
    %v320 = vld [vmem:[#allocation6 + $0x730] sm:$0xff]
    %v321 = vld [vmem:[#allocation6 + $0x738] sm:$0xff]
    %v322 = vld [vmem:[#allocation6 + $0x740] sm:$0xff]
    %v323 = vld [vmem:[#allocation6 + $0x748] sm:$0xff]
    %v324 = vld [vmem:[#allocation6 + $0x750] sm:$0xff]
    %v325 = vld [vmem:[#allocation6 + $0x758] sm:$0xff]
    %v326 = vld [vmem:[#allocation6 + $0x760] sm:$0xff]
    %v327 = vld [vmem:[#allocation6 + $0x768] sm:$0xff]
    %v328 = vld [vmem:[#allocation6 + $0x770] sm:$0xff]
    %v329 = vld [vmem:[#allocation6 + $0x778] sm:$0xff]
    %v330 = vld [vmem:[#allocation8] sm:$0xff]
    %v331 = vld [vmem:[#allocation8 + $0x8] sm:$0xff]
    %v334 = vperm.slane %v330, 0
    %v335 = vperm.slane %v330, 1
    %v336 = vperm.slane %v330, 2
    %v337 = vperm.slane %v330, 3
    %v338 = vperm.slane %v330, 4
    %v339 = vperm.slane %v330, 5
    %v340 = vperm.slane %v330, 6
    %v341 = vperm.slane %v330, 7
    %v342 = vperm.slane %v331, 0
    %v343 = vperm.slane %v331, 1
    %v344 = vperm.slane %v331, 2
    %v345 = vperm.slane %v331, 3
    %v346 = vperm.slane %v331, 4
    %v347 = vperm.slane %v331, 5
    %v348 = vperm.slane %v331, 6
    %364 = vmatpush.msra.mxu0 %v315
    %365 = vmatpush.msra.mxu0 %v300
    %366 = vmatpush.msra.mxu0 %v285
    %367 = vmatpush.msra.mxu0 %v270
    %368 = vmatpush.msra.mxu0 %v255
    %369 = vmatpush.msra.mxu0 %v240
    %370 = vmatpush.msra.mxu0 %v225
    %371 = vmatpush.msra.mxu0 %v210
    %372 = vmatpush.msra.mxu0 %v195
    %373 = vmatpush.msra.mxu0 %v180
    %374 = vmatpush.msra.mxu0 %v165
    %375 = vmatpush.msra.mxu0 %v150
    %376 = vmatpush.msra.mxu0 %v135
    %377 = vmatpush.msra.mxu0 %v120
    %378 = vmatpush.msra.mxu0 %v105
    %379 = vmatpush.msra.mxu0 %v90
    %380 = vmatmul.f32.gmra.mxu0 %v88
    %v381 = vpop.f32.mrf.mxu0
    %v382 = vadd.f32 %v334, %v381
    %383 = vmatmul.f32.gmra.mxu0 %v89
    %v384 = vpop.f32.mrf.mxu0
    %v385 = vadd.f32 %v334, %v384
    %386 = vdwg.mxu0
    %387 = vmatpush.msra.mxu0 %v316
    %388 = vmatpush.msra.mxu0 %v301
    %389 = vmatpush.msra.mxu0 %v286
    %390 = vmatpush.msra.mxu0 %v271
    %391 = vmatpush.msra.mxu0 %v256
    %392 = vmatpush.msra.mxu0 %v241
    %393 = vmatpush.msra.mxu0 %v226
    %394 = vmatpush.msra.mxu0 %v211
    %395 = vmatpush.msra.mxu0 %v196
    %396 = vmatpush.msra.mxu0 %v181
    %397 = vmatpush.msra.mxu0 %v166
    %398 = vmatpush.msra.mxu0 %v151
    %399 = vmatpush.msra.mxu0 %v136
    %400 = vmatpush.msra.mxu0 %v121
    %401 = vmatpush.msra.mxu0 %v106
    %402 = vmatpush.msra.mxu0 %v91
    %403 = vmatmul.f32.gmra.mxu0 %v88
    %v404 = vpop.f32.mrf.mxu0
    %v405 = vadd.f32 %v335, %v404
    %406 = vmatmul.f32.gmra.mxu0 %v89
    %v407 = vpop.f32.mrf.mxu0
    %v408 = vadd.f32 %v335, %v407
    %409 = vdwg.mxu0
    %410 = vmatpush.msra.mxu0 %v317
    %411 = vmatpush.msra.mxu0 %v302
    %412 = vmatpush.msra.mxu0 %v287
    %413 = vmatpush.msra.mxu0 %v272
    %414 = vmatpush.msra.mxu0 %v257
    %415 = vmatpush.msra.mxu0 %v242
    %416 = vmatpush.msra.mxu0 %v227
    %417 = vmatpush.msra.mxu0 %v212
    %418 = vmatpush.msra.mxu0 %v197
    %419 = vmatpush.msra.mxu0 %v182
    %420 = vmatpush.msra.mxu0 %v167
    %421 = vmatpush.msra.mxu0 %v152
    %422 = vmatpush.msra.mxu0 %v137
    %423 = vmatpush.msra.mxu0 %v122
    %424 = vmatpush.msra.mxu0 %v107
    %425 = vmatpush.msra.mxu0 %v92
    %426 = vmatmul.f32.gmra.mxu0 %v88
    %v427 = vpop.f32.mrf.mxu0
    %v428 = vadd.f32 %v336, %v427
    %429 = vmatmul.f32.gmra.mxu0 %v89
    %v430 = vpop.f32.mrf.mxu0
    %v431 = vadd.f32 %v336, %v430
    %432 = vdwg.mxu0
    %433 = vmatpush.msra.mxu0 %v318
    %434 = vmatpush.msra.mxu0 %v303
    %435 = vmatpush.msra.mxu0 %v288
    %436 = vmatpush.msra.mxu0 %v273
    %437 = vmatpush.msra.mxu0 %v258
    %438 = vmatpush.msra.mxu0 %v243
    %439 = vmatpush.msra.mxu0 %v228
    %440 = vmatpush.msra.mxu0 %v213
    %441 = vmatpush.msra.mxu0 %v198
    %442 = vmatpush.msra.mxu0 %v183
    %443 = vmatpush.msra.mxu0 %v168
    %444 = vmatpush.msra.mxu0 %v153
    %445 = vmatpush.msra.mxu0 %v138
    %446 = vmatpush.msra.mxu0 %v123
    %447 = vmatpush.msra.mxu0 %v108
    %448 = vmatpush.msra.mxu0 %v93
    %449 = vmatmul.f32.gmra.mxu0 %v88
    %v450 = vpop.f32.mrf.mxu0
    %v451 = vadd.f32 %v337, %v450
    %452 = vmatmul.f32.gmra.mxu0 %v89
    %v453 = vpop.f32.mrf.mxu0
    %v454 = vadd.f32 %v337, %v453
    %455 = vdwg.mxu0
    %456 = vmatpush.msra.mxu0 %v319
    %457 = vmatpush.msra.mxu0 %v304
    %458 = vmatpush.msra.mxu0 %v289
    %459 = vmatpush.msra.mxu0 %v274
    %460 = vmatpush.msra.mxu0 %v259
    %461 = vmatpush.msra.mxu0 %v244
    %462 = vmatpush.msra.mxu0 %v229
    %463 = vmatpush.msra.mxu0 %v214
    %464 = vmatpush.msra.mxu0 %v199
    %465 = vmatpush.msra.mxu0 %v184
    %466 = vmatpush.msra.mxu0 %v169
    %467 = vmatpush.msra.mxu0 %v154
    %468 = vmatpush.msra.mxu0 %v139
    %469 = vmatpush.msra.mxu0 %v124
    %470 = vmatpush.msra.mxu0 %v109
    %471 = vmatpush.msra.mxu0 %v94
    %472 = vmatmul.f32.gmra.mxu0 %v88
    %v473 = vpop.f32.mrf.mxu0
    %v474 = vadd.f32 %v338, %v473
    %475 = vmatmul.f32.gmra.mxu0 %v89
    %v476 = vpop.f32.mrf.mxu0
    %v477 = vadd.f32 %v338, %v476
    %478 = vdwg.mxu0
    %479 = vmatpush.msra.mxu0 %v320
    %480 = vmatpush.msra.mxu0 %v305
    %481 = vmatpush.msra.mxu0 %v290
    %482 = vmatpush.msra.mxu0 %v275
    %483 = vmatpush.msra.mxu0 %v260
    %484 = vmatpush.msra.mxu0 %v245
    %485 = vmatpush.msra.mxu0 %v230
    %486 = vmatpush.msra.mxu0 %v215
    %487 = vmatpush.msra.mxu0 %v200
    %488 = vmatpush.msra.mxu0 %v185
    %489 = vmatpush.msra.mxu0 %v170
    %490 = vmatpush.msra.mxu0 %v155
    %491 = vmatpush.msra.mxu0 %v140
    %492 = vmatpush.msra.mxu0 %v125
    %493 = vmatpush.msra.mxu0 %v110
    %494 = vmatpush.msra.mxu0 %v95
    %495 = vmatmul.f32.gmra.mxu0 %v88
    %v496 = vpop.f32.mrf.mxu0
    %v497 = vadd.f32 %v339, %v496
    %498 = vmatmul.f32.gmra.mxu0 %v89
    %v499 = vpop.f32.mrf.mxu0
    %v500 = vadd.f32 %v339, %v499
    %501 = vdwg.mxu0
    %502 = vmatpush.msra.mxu0 %v321
    %503 = vmatpush.msra.mxu0 %v306
    %504 = vmatpush.msra.mxu0 %v291
    %505 = vmatpush.msra.mxu0 %v276
    %506 = vmatpush.msra.mxu0 %v261
    %507 = vmatpush.msra.mxu0 %v246
    %508 = vmatpush.msra.mxu0 %v231
    %509 = vmatpush.msra.mxu0 %v216
    %510 = vmatpush.msra.mxu0 %v201
    %511 = vmatpush.msra.mxu0 %v186
    %512 = vmatpush.msra.mxu0 %v171
    %513 = vmatpush.msra.mxu0 %v156
    %514 = vmatpush.msra.mxu0 %v141
    %515 = vmatpush.msra.mxu0 %v126
    %516 = vmatpush.msra.mxu0 %v111
    %517 = vmatpush.msra.mxu0 %v96
    %518 = vmatmul.f32.gmra.mxu0 %v88
    %v519 = vpop.f32.mrf.mxu0
    %v520 = vadd.f32 %v340, %v519
    %521 = vmatmul.f32.gmra.mxu0 %v89
    %v522 = vpop.f32.mrf.mxu0
    %v523 = vadd.f32 %v340, %v522
    %524 = vdwg.mxu0
    %525 = vmatpush.msra.mxu0 %v322
    %526 = vmatpush.msra.mxu0 %v307
    %527 = vmatpush.msra.mxu0 %v292
    %528 = vmatpush.msra.mxu0 %v277
    %529 = vmatpush.msra.mxu0 %v262
    %530 = vmatpush.msra.mxu0 %v247
    %531 = vmatpush.msra.mxu0 %v232
    %532 = vmatpush.msra.mxu0 %v217
    %533 = vmatpush.msra.mxu0 %v202
    %534 = vmatpush.msra.mxu0 %v187
    %535 = vmatpush.msra.mxu0 %v172
    %536 = vmatpush.msra.mxu0 %v157
    %537 = vmatpush.msra.mxu0 %v142
    %538 = vmatpush.msra.mxu0 %v127
    %539 = vmatpush.msra.mxu0 %v112
    %540 = vmatpush.msra.mxu0 %v97
    %541 = vmatmul.f32.gmra.mxu0 %v88
    %v542 = vpop.f32.mrf.mxu0
    %v543 = vadd.f32 %v341, %v542
    %544 = vmatmul.f32.gmra.mxu0 %v89
    %v545 = vpop.f32.mrf.mxu0
    %v546 = vadd.f32 %v341, %v545
    %547 = vdwg.mxu0
    %548 = vmatpush.msra.mxu0 %v323
    %549 = vmatpush.msra.mxu0 %v308
    %550 = vmatpush.msra.mxu0 %v293
    %551 = vmatpush.msra.mxu0 %v278
    %552 = vmatpush.msra.mxu0 %v263
    %553 = vmatpush.msra.mxu0 %v248
    %554 = vmatpush.msra.mxu0 %v233
    %555 = vmatpush.msra.mxu0 %v218
    %556 = vmatpush.msra.mxu0 %v203
    %557 = vmatpush.msra.mxu0 %v188
    %558 = vmatpush.msra.mxu0 %v173
    %559 = vmatpush.msra.mxu0 %v158
    %560 = vmatpush.msra.mxu0 %v143
    %561 = vmatpush.msra.mxu0 %v128
    %562 = vmatpush.msra.mxu0 %v113
    %563 = vmatpush.msra.mxu0 %v98
    %564 = vmatmul.f32.gmra.mxu0 %v88
    %v565 = vpop.f32.mrf.mxu0
    %v566 = vadd.f32 %v342, %v565
    %567 = vmatmul.f32.gmra.mxu0 %v89
    %v568 = vpop.f32.mrf.mxu0
    %v569 = vadd.f32 %v342, %v568
    %570 = vdwg.mxu0
    %571 = vmatpush.msra.mxu0 %v324
    %572 = vmatpush.msra.mxu0 %v309
    %573 = vmatpush.msra.mxu0 %v294
    %574 = vmatpush.msra.mxu0 %v279
    %575 = vmatpush.msra.mxu0 %v264
    %576 = vmatpush.msra.mxu0 %v249
    %577 = vmatpush.msra.mxu0 %v234
    %578 = vmatpush.msra.mxu0 %v219
    %579 = vmatpush.msra.mxu0 %v204
    %580 = vmatpush.msra.mxu0 %v189
    %581 = vmatpush.msra.mxu0 %v174
    %582 = vmatpush.msra.mxu0 %v159
    %583 = vmatpush.msra.mxu0 %v144
    %584 = vmatpush.msra.mxu0 %v129
    %585 = vmatpush.msra.mxu0 %v114
    %586 = vmatpush.msra.mxu0 %v99
    %587 = vmatmul.f32.gmra.mxu0 %v88
    %v588 = vpop.f32.mrf.mxu0
    %v589 = vadd.f32 %v343, %v588
    %590 = vmatmul.f32.gmra.mxu0 %v89
    %v591 = vpop.f32.mrf.mxu0
    %v592 = vadd.f32 %v343, %v591
    %593 = vdwg.mxu0
    %594 = vmatpush.msra.mxu0 %v325
    %595 = vmatpush.msra.mxu0 %v310
    %596 = vmatpush.msra.mxu0 %v295
    %597 = vmatpush.msra.mxu0 %v280
    %598 = vmatpush.msra.mxu0 %v265
    %599 = vmatpush.msra.mxu0 %v250
    %600 = vmatpush.msra.mxu0 %v235
    %601 = vmatpush.msra.mxu0 %v220
    %602 = vmatpush.msra.mxu0 %v205
    %603 = vmatpush.msra.mxu0 %v190
    %604 = vmatpush.msra.mxu0 %v175
    %605 = vmatpush.msra.mxu0 %v160
    %606 = vmatpush.msra.mxu0 %v145
    %607 = vmatpush.msra.mxu0 %v130
    %608 = vmatpush.msra.mxu0 %v115
    %609 = vmatpush.msra.mxu0 %v100
    %610 = vmatmul.f32.gmra.mxu0 %v88
    %v611 = vpop.f32.mrf.mxu0
    %v612 = vadd.f32 %v344, %v611
    %613 = vmatmul.f32.gmra.mxu0 %v89
    %v614 = vpop.f32.mrf.mxu0
    %v615 = vadd.f32 %v344, %v614
    %616 = vdwg.mxu0
    %617 = vmatpush.msra.mxu0 %v326
    %618 = vmatpush.msra.mxu0 %v311
    %619 = vmatpush.msra.mxu0 %v296
    %620 = vmatpush.msra.mxu0 %v281
    %621 = vmatpush.msra.mxu0 %v266
    %622 = vmatpush.msra.mxu0 %v251
    %623 = vmatpush.msra.mxu0 %v236
    %624 = vmatpush.msra.mxu0 %v221
    %625 = vmatpush.msra.mxu0 %v206
    %626 = vmatpush.msra.mxu0 %v191
    %627 = vmatpush.msra.mxu0 %v176
    %628 = vmatpush.msra.mxu0 %v161
    %629 = vmatpush.msra.mxu0 %v146
    %630 = vmatpush.msra.mxu0 %v131
    %631 = vmatpush.msra.mxu0 %v116
    %632 = vmatpush.msra.mxu0 %v101
    %633 = vmatmul.f32.gmra.mxu0 %v88
    %v634 = vpop.f32.mrf.mxu0
    %v635 = vadd.f32 %v345, %v634
    %636 = vmatmul.f32.gmra.mxu0 %v89
    %v637 = vpop.f32.mrf.mxu0
    %v638 = vadd.f32 %v345, %v637
    %639 = vdwg.mxu0
    %640 = vmatpush.msra.mxu0 %v327
    %641 = vmatpush.msra.mxu0 %v312
    %642 = vmatpush.msra.mxu0 %v297
    %643 = vmatpush.msra.mxu0 %v282
    %644 = vmatpush.msra.mxu0 %v267
    %645 = vmatpush.msra.mxu0 %v252
    %646 = vmatpush.msra.mxu0 %v237
    %647 = vmatpush.msra.mxu0 %v222
    %648 = vmatpush.msra.mxu0 %v207
    %649 = vmatpush.msra.mxu0 %v192
    %650 = vmatpush.msra.mxu0 %v177
    %651 = vmatpush.msra.mxu0 %v162
    %652 = vmatpush.msra.mxu0 %v147
    %653 = vmatpush.msra.mxu0 %v132
    %654 = vmatpush.msra.mxu0 %v117
    %655 = vmatpush.msra.mxu0 %v102
    %656 = vmatmul.f32.gmra.mxu0 %v88
    %v657 = vpop.f32.mrf.mxu0
    %v658 = vadd.f32 %v346, %v657
    %659 = vmatmul.f32.gmra.mxu0 %v89
    %v660 = vpop.f32.mrf.mxu0
    %v661 = vadd.f32 %v346, %v660
    %662 = vdwg.mxu0
    %663 = vmatpush.msra.mxu0 %v328
    %664 = vmatpush.msra.mxu0 %v313
    %665 = vmatpush.msra.mxu0 %v298
    %666 = vmatpush.msra.mxu0 %v283
    %667 = vmatpush.msra.mxu0 %v268
    %668 = vmatpush.msra.mxu0 %v253
    %669 = vmatpush.msra.mxu0 %v238
    %670 = vmatpush.msra.mxu0 %v223
    %671 = vmatpush.msra.mxu0 %v208
    %672 = vmatpush.msra.mxu0 %v193
    %673 = vmatpush.msra.mxu0 %v178
    %674 = vmatpush.msra.mxu0 %v163
    %675 = vmatpush.msra.mxu0 %v148
    %676 = vmatpush.msra.mxu0 %v133
    %677 = vmatpush.msra.mxu0 %v118
    %678 = vmatpush.msra.mxu0 %v103
    %679 = vmatmul.f32.gmra.mxu0 %v88
    %v680 = vpop.f32.mrf.mxu0
    %v681 = vadd.f32 %v347, %v680
    %682 = vmatmul.f32.gmra.mxu0 %v89
    %v683 = vpop.f32.mrf.mxu0
    %v684 = vadd.f32 %v347, %v683
    %685 = vdwg.mxu0
    %686 = vmatpush.msra.mxu0 %v329
    %687 = vmatpush.msra.mxu0 %v314
    %688 = vmatpush.msra.mxu0 %v299
    %689 = vmatpush.msra.mxu0 %v284
    %690 = vmatpush.msra.mxu0 %v269
    %691 = vmatpush.msra.mxu0 %v254
    %692 = vmatpush.msra.mxu0 %v239
    %693 = vmatpush.msra.mxu0 %v224
    %694 = vmatpush.msra.mxu0 %v209
    %695 = vmatpush.msra.mxu0 %v194
    %696 = vmatpush.msra.mxu0 %v179
    %697 = vmatpush.msra.mxu0 %v164
    %698 = vmatpush.msra.mxu0 %v149
    %699 = vmatpush.msra.mxu0 %v134
    %700 = vmatpush.msra.mxu0 %v119
    %701 = vmatpush.msra.mxu0 %v104
    %702 = vmatmul.f32.gmra.mxu0 %v88
    %v703 = vpop.f32.mrf.mxu0
    %v704 = vadd.f32 %v348, %v703
    %705 = vmatmul.f32.gmra.mxu0 %v89
    %v706 = vpop.f32.mrf.mxu0
    %v707 = vadd.f32 %v348, %v706
    %708 = vdwg.mxu0
    %709 = vmatpush.xpose.msra.mxu0 0.0
    %710 = vmatpush.xpose.msra.mxu0 0.0
    %711 = vmatpush.xpose.msra.mxu0 0.0
    %712 = vmatpush.xpose.msra.mxu0 0.0
    %713 = vmatpush.xpose.msra.mxu0 0.0
    %714 = vmatpush.xpose.msra.mxu0 0.0
    %715 = vmatpush.xpose.msra.mxu0 0.0
    %716 = vmatpush.xpose.msra.mxu0 0.0
    %717 = vmatpush.xpose.msra.mxu0 0.0
    %718 = vmatpush.xpose.msra.mxu0 0.0
    %719 = vmatpush.xpose.msra.mxu0 0.0
    %720 = vmatpush.xpose.msra.mxu0 0.0
    %721 = vmatpush.xpose.msra.mxu0 0.0
    %722 = vmatpush.xpose.msra.mxu0 0.0
    %723 = vmatpush.xpose.msra.mxu0 0.0
    %724 = vmatpush.xpose.msra.mxu0 %v497
    %725 = vmatmul.f32.gmra.mxu0 %v382
    %v726 = vpop.f32.mrf.mxu0
    %v727 = vadd.f32 0.0, %v726
    %728 = vdwg.mxu0
    %729 = vmatpush.xpose.msra.mxu0 0.0
    %730 = vmatpush.xpose.msra.mxu0 0.0
    %731 = vmatpush.xpose.msra.mxu0 0.0
    %732 = vmatpush.xpose.msra.mxu0 0.0
    %733 = vmatpush.xpose.msra.mxu0 0.0
    %734 = vmatpush.xpose.msra.mxu0 0.0
    %735 = vmatpush.xpose.msra.mxu0 0.0
    %736 = vmatpush.xpose.msra.mxu0 0.0
    %737 = vmatpush.xpose.msra.mxu0 0.0
    %738 = vmatpush.xpose.msra.mxu0 0.0
    %739 = vmatpush.xpose.msra.mxu0 0.0
    %740 = vmatpush.xpose.msra.mxu0 0.0
    %741 = vmatpush.xpose.msra.mxu0 0.0
    %742 = vmatpush.xpose.msra.mxu0 0.0
    %743 = vmatpush.xpose.msra.mxu0 0.0
    %744 = vmatpush.xpose.msra.mxu0 %v500
    %745 = vmatmul.f32.gmra.mxu0 %v385
    %v746 = vpop.f32.mrf.mxu0
    %v747 = vadd.f32 0.0, %v746
    %748 = vdwg.mxu0
    %vm749 = vcmask 64512
    %v750 = vsel %vm749, %v727, -inf
    %751 = vmax.xlane.f32.xlu0 %v750
    %v752 = vpop.xlane.xlu0 %751
    %v753 = vsel %vm749, %v747, -inf
    %754 = vmax.xlane.f32.xlu0 %v753
    %v755 = vpop.xlane.xlu0 %754
    %v756 = vsub.f32 %v727, %v752
    %v757 = vsub.f32 %v747, %v755
    %v758 = vmul.f32 %v756, 1.442695
    %v759 = vpow.pop %v758
    %v760 = vmul.f32 %v757, 1.442695
    %v761 = vpow.pop %v760
    %v762 = vsel %vm749, %v759, 0.0
    %763 = vadd.xlane.f32.xlu0 %v762
    %v764 = vpop.xlane.xlu0 %763
    %v765 = vsel %vm749, %v761, 0.0
    %766 = vadd.xlane.f32.xlu0 %v765
    %v767 = vpop.xlane.xlu0 %766
    %v768 = vrcp.pop %v764
    %v769 = vrcp.pop %v767
    %v770 = vmul.f32 %v759, %v768
    %v771 = vmul.f32 %v761, %v769
    %v773 = vsel %vm749, %v770, 0
    %775 = vmatpush.msra.mxu0 0.0
    %776 = vmatpush.msra.mxu0 0.0
    %777 = vmatpush.msra.mxu0 0.0
    %778 = vmatpush.msra.mxu0 0.0
    %779 = vmatpush.msra.mxu0 0.0
    %780 = vmatpush.msra.mxu0 0.0
    %781 = vmatpush.msra.mxu0 0.0
    %782 = vmatpush.msra.mxu0 0.0
    %783 = vmatpush.msra.mxu0 0.0
    %784 = vmatpush.msra.mxu0 0.0
    %785 = vmatpush.msra.mxu0 0.0
    %786 = vmatpush.msra.mxu0 0.0
    %787 = vmatpush.msra.mxu0 0.0
    %788 = vmatpush.msra.mxu0 0.0
    %789 = vmatpush.msra.mxu0 0.0
    %790 = vmatpush.msra.mxu0 %v612
    %791 = vmatmul.f32.gmra.mxu0 %v773
    %v792 = vpop.f32.mrf.mxu0
    %v793 = vadd.f32 0.0, %v792
    %794 = vdwg.mxu0
    %v796 = vsel %vm749, %v771, 0
    %798 = vmatpush.msra.mxu0 0.0
    %799 = vmatpush.msra.mxu0 0.0
    %800 = vmatpush.msra.mxu0 0.0
    %801 = vmatpush.msra.mxu0 0.0
    %802 = vmatpush.msra.mxu0 0.0
    %803 = vmatpush.msra.mxu0 0.0
    %804 = vmatpush.msra.mxu0 0.0
    %805 = vmatpush.msra.mxu0 0.0
    %806 = vmatpush.msra.mxu0 0.0
    %807 = vmatpush.msra.mxu0 0.0
    %808 = vmatpush.msra.mxu0 0.0
    %809 = vmatpush.msra.mxu0 0.0
    %810 = vmatpush.msra.mxu0 0.0
    %811 = vmatpush.msra.mxu0 0.0
    %812 = vmatpush.msra.mxu0 0.0
    %813 = vmatpush.msra.mxu0 %v615
    %814 = vmatmul.f32.gmra.mxu0 %v796
    %v815 = vpop.f32.mrf.mxu0
    %v816 = vadd.f32 0.0, %v815
    %817 = vdwg.mxu0
    %818 = vst [vmem:[#allocation2] sm:$0xff] %v793
    %819 = vst [vmem:[#allocation2 + $0x28] sm:$0xff] %v816
    %820 = vmatpush.xpose.msra.mxu0 0.0
    %821 = vmatpush.xpose.msra.mxu0 0.0
    %822 = vmatpush.xpose.msra.mxu0 0.0
    %823 = vmatpush.xpose.msra.mxu0 0.0
    %824 = vmatpush.xpose.msra.mxu0 0.0
    %825 = vmatpush.xpose.msra.mxu0 0.0
    %826 = vmatpush.xpose.msra.mxu0 0.0
    %827 = vmatpush.xpose.msra.mxu0 0.0
    %828 = vmatpush.xpose.msra.mxu0 0.0
    %829 = vmatpush.xpose.msra.mxu0 0.0
    %830 = vmatpush.xpose.msra.mxu0 0.0
    %831 = vmatpush.xpose.msra.mxu0 0.0
    %832 = vmatpush.xpose.msra.mxu0 0.0
    %833 = vmatpush.xpose.msra.mxu0 0.0
    %834 = vmatpush.xpose.msra.mxu0 0.0
    %835 = vmatpush.xpose.msra.mxu0 %v520
    %836 = vmatmul.f32.gmra.mxu0 %v405
    %v837 = vpop.f32.mrf.mxu0
    %v838 = vadd.f32 0.0, %v837
    %839 = vdwg.mxu0
    %840 = vmatpush.xpose.msra.mxu0 0.0
    %841 = vmatpush.xpose.msra.mxu0 0.0
    %842 = vmatpush.xpose.msra.mxu0 0.0
    %843 = vmatpush.xpose.msra.mxu0 0.0
    %844 = vmatpush.xpose.msra.mxu0 0.0
    %845 = vmatpush.xpose.msra.mxu0 0.0
    %846 = vmatpush.xpose.msra.mxu0 0.0
    %847 = vmatpush.xpose.msra.mxu0 0.0
    %848 = vmatpush.xpose.msra.mxu0 0.0
    %849 = vmatpush.xpose.msra.mxu0 0.0
    %850 = vmatpush.xpose.msra.mxu0 0.0
    %851 = vmatpush.xpose.msra.mxu0 0.0
    %852 = vmatpush.xpose.msra.mxu0 0.0
    %853 = vmatpush.xpose.msra.mxu0 0.0
    %854 = vmatpush.xpose.msra.mxu0 0.0
    %855 = vmatpush.xpose.msra.mxu0 %v523
    %856 = vmatmul.f32.gmra.mxu0 %v408
    %v857 = vpop.f32.mrf.mxu0
    %v858 = vadd.f32 0.0, %v857
    %859 = vdwg.mxu0
    %v860 = vsel %vm749, %v838, -inf
    %861 = vmax.xlane.f32.xlu0 %v860
    %v862 = vpop.xlane.xlu0 %861
    %v863 = vsel %vm749, %v858, -inf
    %864 = vmax.xlane.f32.xlu0 %v863
    %v865 = vpop.xlane.xlu0 %864
    %v866 = vsub.f32 %v838, %v862
    %v867 = vsub.f32 %v858, %v865
    %v868 = vmul.f32 %v866, 1.442695
    %v869 = vpow.pop %v868
    %v870 = vmul.f32 %v867, 1.442695
    %v871 = vpow.pop %v870
    %v872 = vsel %vm749, %v869, 0.0
    %873 = vadd.xlane.f32.xlu0 %v872
    %v874 = vpop.xlane.xlu0 %873
    %v875 = vsel %vm749, %v871, 0.0
    %876 = vadd.xlane.f32.xlu0 %v875
    %v877 = vpop.xlane.xlu0 %876
    %v878 = vrcp.pop %v874
    %v879 = vrcp.pop %v877
    %v880 = vmul.f32 %v869, %v878
    %v881 = vmul.f32 %v871, %v879
    %v883 = vsel %vm749, %v880, 0
    %885 = vmatpush.msra.mxu0 0.0
    %886 = vmatpush.msra.mxu0 0.0
    %887 = vmatpush.msra.mxu0 0.0
    %888 = vmatpush.msra.mxu0 0.0
    %889 = vmatpush.msra.mxu0 0.0
    %890 = vmatpush.msra.mxu0 0.0
    %891 = vmatpush.msra.mxu0 0.0
    %892 = vmatpush.msra.mxu0 0.0
    %893 = vmatpush.msra.mxu0 0.0
    %894 = vmatpush.msra.mxu0 0.0
    %895 = vmatpush.msra.mxu0 0.0
    %896 = vmatpush.msra.mxu0 0.0
    %897 = vmatpush.msra.mxu0 0.0
    %898 = vmatpush.msra.mxu0 0.0
    %899 = vmatpush.msra.mxu0 0.0
    %900 = vmatpush.msra.mxu0 %v635
    %901 = vmatmul.f32.gmra.mxu0 %v883
    %v902 = vpop.f32.mrf.mxu0
    %v903 = vadd.f32 0.0, %v902
    %904 = vdwg.mxu0
    %v906 = vsel %vm749, %v881, 0
    %908 = vmatpush.msra.mxu0 0.0
    %909 = vmatpush.msra.mxu0 0.0
    %910 = vmatpush.msra.mxu0 0.0
    %911 = vmatpush.msra.mxu0 0.0
    %912 = vmatpush.msra.mxu0 0.0
    %913 = vmatpush.msra.mxu0 0.0
    %914 = vmatpush.msra.mxu0 0.0
    %915 = vmatpush.msra.mxu0 0.0
    %916 = vmatpush.msra.mxu0 0.0
    %917 = vmatpush.msra.mxu0 0.0
    %918 = vmatpush.msra.mxu0 0.0
    %919 = vmatpush.msra.mxu0 0.0
    %920 = vmatpush.msra.mxu0 0.0
    %921 = vmatpush.msra.mxu0 0.0
    %922 = vmatpush.msra.mxu0 0.0
    %923 = vmatpush.msra.mxu0 %v638
    %924 = vmatmul.f32.gmra.mxu0 %v906
    %v925 = vpop.f32.mrf.mxu0
    %v926 = vadd.f32 0.0, %v925
    %927 = vdwg.mxu0
    %928 = vst [vmem:[#allocation2 + $0x8] sm:$0xff] %v903
    %929 = vst [vmem:[#allocation2 + $0x30] sm:$0xff] %v926
    %930 = vmatpush.xpose.msra.mxu0 0.0
    %931 = vmatpush.xpose.msra.mxu0 0.0
    %932 = vmatpush.xpose.msra.mxu0 0.0
    %933 = vmatpush.xpose.msra.mxu0 0.0
    %934 = vmatpush.xpose.msra.mxu0 0.0
    %935 = vmatpush.xpose.msra.mxu0 0.0
    %936 = vmatpush.xpose.msra.mxu0 0.0
    %937 = vmatpush.xpose.msra.mxu0 0.0
    %938 = vmatpush.xpose.msra.mxu0 0.0
    %939 = vmatpush.xpose.msra.mxu0 0.0
    %940 = vmatpush.xpose.msra.mxu0 0.0
    %941 = vmatpush.xpose.msra.mxu0 0.0
    %942 = vmatpush.xpose.msra.mxu0 0.0
    %943 = vmatpush.xpose.msra.mxu0 0.0
    %944 = vmatpush.xpose.msra.mxu0 0.0
    %945 = vmatpush.xpose.msra.mxu0 %v543
    %946 = vmatmul.f32.gmra.mxu0 %v428
    %v947 = vpop.f32.mrf.mxu0
    %v948 = vadd.f32 0.0, %v947
    %949 = vdwg.mxu0
    %950 = vmatpush.xpose.msra.mxu0 0.0
    %951 = vmatpush.xpose.msra.mxu0 0.0
    %952 = vmatpush.xpose.msra.mxu0 0.0
    %953 = vmatpush.xpose.msra.mxu0 0.0
    %954 = vmatpush.xpose.msra.mxu0 0.0
    %955 = vmatpush.xpose.msra.mxu0 0.0
    %956 = vmatpush.xpose.msra.mxu0 0.0
    %957 = vmatpush.xpose.msra.mxu0 0.0
    %958 = vmatpush.xpose.msra.mxu0 0.0
    %959 = vmatpush.xpose.msra.mxu0 0.0
    %960 = vmatpush.xpose.msra.mxu0 0.0
    %961 = vmatpush.xpose.msra.mxu0 0.0
    %962 = vmatpush.xpose.msra.mxu0 0.0
    %963 = vmatpush.xpose.msra.mxu0 0.0
    %964 = vmatpush.xpose.msra.mxu0 0.0
    %965 = vmatpush.xpose.msra.mxu0 %v546
    %966 = vmatmul.f32.gmra.mxu0 %v431
    %v967 = vpop.f32.mrf.mxu0
    %v968 = vadd.f32 0.0, %v967
    %969 = vdwg.mxu0
    %v970 = vsel %vm749, %v948, -inf
    %971 = vmax.xlane.f32.xlu0 %v970
    %v972 = vpop.xlane.xlu0 %971
    %v973 = vsel %vm749, %v968, -inf
    %974 = vmax.xlane.f32.xlu0 %v973
    %v975 = vpop.xlane.xlu0 %974
    %v976 = vsub.f32 %v948, %v972
    %v977 = vsub.f32 %v968, %v975
    %v978 = vmul.f32 %v976, 1.442695
    %v979 = vpow.pop %v978
    %v980 = vmul.f32 %v977, 1.442695
    %v981 = vpow.pop %v980
    %v982 = vsel %vm749, %v979, 0.0
    %983 = vadd.xlane.f32.xlu0 %v982
    %v984 = vpop.xlane.xlu0 %983
    %v985 = vsel %vm749, %v981, 0.0
    %986 = vadd.xlane.f32.xlu0 %v985
    %v987 = vpop.xlane.xlu0 %986
    %v988 = vrcp.pop %v984
    %v989 = vrcp.pop %v987
    %v990 = vmul.f32 %v979, %v988
    %v991 = vmul.f32 %v981, %v989
    %v993 = vsel %vm749, %v990, 0
    %995 = vmatpush.msra.mxu0 0.0
    %996 = vmatpush.msra.mxu0 0.0
    %997 = vmatpush.msra.mxu0 0.0
    %998 = vmatpush.msra.mxu0 0.0
    %999 = vmatpush.msra.mxu0 0.0
    %1000 = vmatpush.msra.mxu0 0.0
    %1001 = vmatpush.msra.mxu0 0.0
    %1002 = vmatpush.msra.mxu0 0.0
    %1003 = vmatpush.msra.mxu0 0.0
    %1004 = vmatpush.msra.mxu0 0.0
    %1005 = vmatpush.msra.mxu0 0.0
    %1006 = vmatpush.msra.mxu0 0.0
    %1007 = vmatpush.msra.mxu0 0.0
    %1008 = vmatpush.msra.mxu0 0.0
    %1009 = vmatpush.msra.mxu0 0.0
    %1010 = vmatpush.msra.mxu0 %v658
    %1011 = vmatmul.f32.gmra.mxu0 %v993
    %v1012 = vpop.f32.mrf.mxu0
    %v1013 = vadd.f32 0.0, %v1012
    %1014 = vdwg.mxu0
    %v1016 = vsel %vm749, %v991, 0
    %1018 = vmatpush.msra.mxu0 0.0
    %1019 = vmatpush.msra.mxu0 0.0
    %1020 = vmatpush.msra.mxu0 0.0
    %1021 = vmatpush.msra.mxu0 0.0
    %1022 = vmatpush.msra.mxu0 0.0
    %1023 = vmatpush.msra.mxu0 0.0
    %1024 = vmatpush.msra.mxu0 0.0
    %1025 = vmatpush.msra.mxu0 0.0
    %1026 = vmatpush.msra.mxu0 0.0
    %1027 = vmatpush.msra.mxu0 0.0
    %1028 = vmatpush.msra.mxu0 0.0
    %1029 = vmatpush.msra.mxu0 0.0
    %1030 = vmatpush.msra.mxu0 0.0
    %1031 = vmatpush.msra.mxu0 0.0
    %1032 = vmatpush.msra.mxu0 0.0
    %1033 = vmatpush.msra.mxu0 %v661
    %1034 = vmatmul.f32.gmra.mxu0 %v1016
    %v1035 = vpop.f32.mrf.mxu0
    %v1036 = vadd.f32 0.0, %v1035
    %1037 = vdwg.mxu0
    %1038 = vst [vmem:[#allocation2 + $0x10] sm:$0xff] %v1013
    %1039 = vst [vmem:[#allocation2 + $0x38] sm:$0xff] %v1036
    %1040 = vmatpush.xpose.msra.mxu0 0.0
    %1041 = vmatpush.xpose.msra.mxu0 0.0
    %1042 = vmatpush.xpose.msra.mxu0 0.0
    %1043 = vmatpush.xpose.msra.mxu0 0.0
    %1044 = vmatpush.xpose.msra.mxu0 0.0
    %1045 = vmatpush.xpose.msra.mxu0 0.0
    %1046 = vmatpush.xpose.msra.mxu0 0.0
    %1047 = vmatpush.xpose.msra.mxu0 0.0
    %1048 = vmatpush.xpose.msra.mxu0 0.0
    %1049 = vmatpush.xpose.msra.mxu0 0.0
    %1050 = vmatpush.xpose.msra.mxu0 0.0
    %1051 = vmatpush.xpose.msra.mxu0 0.0
    %1052 = vmatpush.xpose.msra.mxu0 0.0
    %1053 = vmatpush.xpose.msra.mxu0 0.0
    %1054 = vmatpush.xpose.msra.mxu0 0.0
    %1055 = vmatpush.xpose.msra.mxu0 %v566
    %1056 = vmatmul.f32.gmra.mxu0 %v451
    %v1057 = vpop.f32.mrf.mxu0
    %v1058 = vadd.f32 0.0, %v1057
    %1059 = vdwg.mxu0
    %1060 = vmatpush.xpose.msra.mxu0 0.0
    %1061 = vmatpush.xpose.msra.mxu0 0.0
    %1062 = vmatpush.xpose.msra.mxu0 0.0
    %1063 = vmatpush.xpose.msra.mxu0 0.0
    %1064 = vmatpush.xpose.msra.mxu0 0.0
    %1065 = vmatpush.xpose.msra.mxu0 0.0
    %1066 = vmatpush.xpose.msra.mxu0 0.0
    %1067 = vmatpush.xpose.msra.mxu0 0.0
    %1068 = vmatpush.xpose.msra.mxu0 0.0
    %1069 = vmatpush.xpose.msra.mxu0 0.0
    %1070 = vmatpush.xpose.msra.mxu0 0.0
    %1071 = vmatpush.xpose.msra.mxu0 0.0
    %1072 = vmatpush.xpose.msra.mxu0 0.0
    %1073 = vmatpush.xpose.msra.mxu0 0.0
    %1074 = vmatpush.xpose.msra.mxu0 0.0
    %1075 = vmatpush.xpose.msra.mxu0 %v569
    %1076 = vmatmul.f32.gmra.mxu0 %v454
    %v1077 = vpop.f32.mrf.mxu0
    %v1078 = vadd.f32 0.0, %v1077
    %1079 = vdwg.mxu0
    %v1080 = vsel %vm749, %v1058, -inf
    %1081 = vmax.xlane.f32.xlu0 %v1080
    %v1082 = vpop.xlane.xlu0 %1081
    %v1083 = vsel %vm749, %v1078, -inf
    %1084 = vmax.xlane.f32.xlu0 %v1083
    %v1085 = vpop.xlane.xlu0 %1084
    %v1086 = vsub.f32 %v1058, %v1082
    %v1087 = vsub.f32 %v1078, %v1085
    %v1088 = vmul.f32 %v1086, 1.442695
    %v1089 = vpow.pop %v1088
    %v1090 = vmul.f32 %v1087, 1.442695
    %v1091 = vpow.pop %v1090
    %v1092 = vsel %vm749, %v1089, 0.0
    %1093 = vadd.xlane.f32.xlu0 %v1092
    %v1094 = vpop.xlane.xlu0 %1093
    %v1095 = vsel %vm749, %v1091, 0.0
    %1096 = vadd.xlane.f32.xlu0 %v1095
    %v1097 = vpop.xlane.xlu0 %1096
    %v1098 = vrcp.pop %v1094
    %v1099 = vrcp.pop %v1097
    %v1100 = vmul.f32 %v1089, %v1098
    %v1101 = vmul.f32 %v1091, %v1099
    %v1103 = vsel %vm749, %v1100, 0
    %1105 = vmatpush.msra.mxu0 0.0
    %1106 = vmatpush.msra.mxu0 0.0
    %1107 = vmatpush.msra.mxu0 0.0
    %1108 = vmatpush.msra.mxu0 0.0
    %1109 = vmatpush.msra.mxu0 0.0
    %1110 = vmatpush.msra.mxu0 0.0
    %1111 = vmatpush.msra.mxu0 0.0
    %1112 = vmatpush.msra.mxu0 0.0
    %1113 = vmatpush.msra.mxu0 0.0
    %1114 = vmatpush.msra.mxu0 0.0
    %1115 = vmatpush.msra.mxu0 0.0
    %1116 = vmatpush.msra.mxu0 0.0
    %1117 = vmatpush.msra.mxu0 0.0
    %1118 = vmatpush.msra.mxu0 0.0
    %1119 = vmatpush.msra.mxu0 0.0
    %1120 = vmatpush.msra.mxu0 %v681
    %1121 = vmatmul.f32.gmra.mxu0 %v1103
    %v1122 = vpop.f32.mrf.mxu0
    %v1123 = vadd.f32 0.0, %v1122
    %1124 = vdwg.mxu0
    %v1126 = vsel %vm749, %v1101, 0
    %1128 = vmatpush.msra.mxu0 0.0
    %1129 = vmatpush.msra.mxu0 0.0
    %1130 = vmatpush.msra.mxu0 0.0
    %1131 = vmatpush.msra.mxu0 0.0
    %1132 = vmatpush.msra.mxu0 0.0
    %1133 = vmatpush.msra.mxu0 0.0
    %1134 = vmatpush.msra.mxu0 0.0
    %1135 = vmatpush.msra.mxu0 0.0
    %1136 = vmatpush.msra.mxu0 0.0
    %1137 = vmatpush.msra.mxu0 0.0
    %1138 = vmatpush.msra.mxu0 0.0
    %1139 = vmatpush.msra.mxu0 0.0
    %1140 = vmatpush.msra.mxu0 0.0
    %1141 = vmatpush.msra.mxu0 0.0
    %1142 = vmatpush.msra.mxu0 0.0
    %1143 = vmatpush.msra.mxu0 %v684
    %1144 = vmatmul.f32.gmra.mxu0 %v1126
    %v1145 = vpop.f32.mrf.mxu0
    %v1146 = vadd.f32 0.0, %v1145
    %1147 = vdwg.mxu0
    %1148 = vst [vmem:[#allocation2 + $0x18] sm:$0xff] %v1123
    %1149 = vst [vmem:[#allocation2 + $0x40] sm:$0xff] %v1146
    %1150 = vmatpush.xpose.msra.mxu0 0.0
    %1151 = vmatpush.xpose.msra.mxu0 0.0
    %1152 = vmatpush.xpose.msra.mxu0 0.0
    %1153 = vmatpush.xpose.msra.mxu0 0.0
    %1154 = vmatpush.xpose.msra.mxu0 0.0
    %1155 = vmatpush.xpose.msra.mxu0 0.0
    %1156 = vmatpush.xpose.msra.mxu0 0.0
    %1157 = vmatpush.xpose.msra.mxu0 0.0
    %1158 = vmatpush.xpose.msra.mxu0 0.0
    %1159 = vmatpush.xpose.msra.mxu0 0.0
    %1160 = vmatpush.xpose.msra.mxu0 0.0
    %1161 = vmatpush.xpose.msra.mxu0 0.0
    %1162 = vmatpush.xpose.msra.mxu0 0.0
    %1163 = vmatpush.xpose.msra.mxu0 0.0
    %1164 = vmatpush.xpose.msra.mxu0 0.0
    %1165 = vmatpush.xpose.msra.mxu0 %v589
    %1166 = vmatmul.f32.gmra.mxu0 %v474
    %v1167 = vpop.f32.mrf.mxu0
    %v1168 = vadd.f32 0.0, %v1167
    %1169 = vdwg.mxu0
    %1170 = vmatpush.xpose.msra.mxu0 0.0
    %1171 = vmatpush.xpose.msra.mxu0 0.0
    %1172 = vmatpush.xpose.msra.mxu0 0.0
    %1173 = vmatpush.xpose.msra.mxu0 0.0
    %1174 = vmatpush.xpose.msra.mxu0 0.0
    %1175 = vmatpush.xpose.msra.mxu0 0.0
    %1176 = vmatpush.xpose.msra.mxu0 0.0
    %1177 = vmatpush.xpose.msra.mxu0 0.0
    %1178 = vmatpush.xpose.msra.mxu0 0.0
    %1179 = vmatpush.xpose.msra.mxu0 0.0
    %1180 = vmatpush.xpose.msra.mxu0 0.0
    %1181 = vmatpush.xpose.msra.mxu0 0.0
    %1182 = vmatpush.xpose.msra.mxu0 0.0
    %1183 = vmatpush.xpose.msra.mxu0 0.0
    %1184 = vmatpush.xpose.msra.mxu0 0.0
    %1185 = vmatpush.xpose.msra.mxu0 %v592
    %1186 = vmatmul.f32.gmra.mxu0 %v477
    %v1187 = vpop.f32.mrf.mxu0
    %v1188 = vadd.f32 0.0, %v1187
    %1189 = vdwg.mxu0
    %v1190 = vsel %vm749, %v1168, -inf
    %1191 = vmax.xlane.f32.xlu0 %v1190
    %v1192 = vpop.xlane.xlu0 %1191
    %v1193 = vsel %vm749, %v1188, -inf
    %1194 = vmax.xlane.f32.xlu0 %v1193
    %v1195 = vpop.xlane.xlu0 %1194
    %v1196 = vsub.f32 %v1168, %v1192
    %v1197 = vsub.f32 %v1188, %v1195
    %v1198 = vmul.f32 %v1196, 1.442695
    %v1199 = vpow.pop %v1198
    %v1200 = vmul.f32 %v1197, 1.442695
    %v1201 = vpow.pop %v1200
    %v1202 = vsel %vm749, %v1199, 0.0
    %1203 = vadd.xlane.f32.xlu0 %v1202
    %v1204 = vpop.xlane.xlu0 %1203
    %v1205 = vsel %vm749, %v1201, 0.0
    %1206 = vadd.xlane.f32.xlu0 %v1205
    %v1207 = vpop.xlane.xlu0 %1206
    %v1208 = vrcp.pop %v1204
    %v1209 = vrcp.pop %v1207
    %v1210 = vmul.f32 %v1199, %v1208
    %v1211 = vmul.f32 %v1201, %v1209
    %v1213 = vsel %vm749, %v1210, 0
    %1215 = vmatpush.msra.mxu0 0.0
    %1216 = vmatpush.msra.mxu0 0.0
    %1217 = vmatpush.msra.mxu0 0.0
    %1218 = vmatpush.msra.mxu0 0.0
    %1219 = vmatpush.msra.mxu0 0.0
    %1220 = vmatpush.msra.mxu0 0.0
    %1221 = vmatpush.msra.mxu0 0.0
    %1222 = vmatpush.msra.mxu0 0.0
    %1223 = vmatpush.msra.mxu0 0.0
    %1224 = vmatpush.msra.mxu0 0.0
    %1225 = vmatpush.msra.mxu0 0.0
    %1226 = vmatpush.msra.mxu0 0.0
    %1227 = vmatpush.msra.mxu0 0.0
    %1228 = vmatpush.msra.mxu0 0.0
    %1229 = vmatpush.msra.mxu0 0.0
    %1230 = vmatpush.msra.mxu0 %v704
    %1231 = vmatmul.f32.gmra.mxu0 %v1213
    %v1232 = vpop.f32.mrf.mxu0
    %v1233 = vadd.f32 0.0, %v1232
    %1234 = vdwg.mxu0
    %v1236 = vsel %vm749, %v1211, 0
    %1238 = vmatpush.msra.mxu0 0.0
    %1239 = vmatpush.msra.mxu0 0.0
    %1240 = vmatpush.msra.mxu0 0.0
    %1241 = vmatpush.msra.mxu0 0.0
    %1242 = vmatpush.msra.mxu0 0.0
    %1243 = vmatpush.msra.mxu0 0.0
    %1244 = vmatpush.msra.mxu0 0.0
    %1245 = vmatpush.msra.mxu0 0.0
    %1246 = vmatpush.msra.mxu0 0.0
    %1247 = vmatpush.msra.mxu0 0.0
    %1248 = vmatpush.msra.mxu0 0.0
    %1249 = vmatpush.msra.mxu0 0.0
    %1250 = vmatpush.msra.mxu0 0.0
    %1251 = vmatpush.msra.mxu0 0.0
    %1252 = vmatpush.msra.mxu0 0.0
    %1253 = vmatpush.msra.mxu0 %v707
    %1254 = vmatmul.f32.gmra.mxu0 %v1236
    %v1255 = vpop.f32.mrf.mxu0
    %v1256 = vadd.f32 0.0, %v1255
    %1257 = vdwg.mxu0
    %1258 = vst [vmem:[#allocation2 + $0x20] sm:$0xff] %v1233
    %1259 = vst [vmem:[#allocation2 + $0x48] sm:$0xff] %v1256
    %v1260 = vld [vmem:[#allocation2] sm:$0xff]
    %v1261 = vld [vmem:[#allocation2 + $0x8] sm:$0xff]
    %v1262 = vld [vmem:[#allocation2 + $0x10] sm:$0xff]
    %v1263 = vld [vmem:[#allocation2 + $0x18] sm:$0xff]
    %v1264 = vld [vmem:[#allocation2 + $0x20] sm:$0xff]
    %v1265 = vld [vmem:[#allocation2 + $0x28] sm:$0xff]
    %v1266 = vld [vmem:[#allocation2 + $0x30] sm:$0xff]
    %v1267 = vld [vmem:[#allocation2 + $0x38] sm:$0xff]
    %v1268 = vld [vmem:[#allocation2 + $0x40] sm:$0xff]
    %v1269 = vld [vmem:[#allocation2 + $0x48] sm:$0xff]
    %v1270 = vld [vmem:[#allocation9] sm:$0xff]
    %v1271 = vld [vmem:[#allocation9 + $0x8] sm:$0xff]
    %v1272 = vld [vmem:[#allocation9 + $0x10] sm:$0xff]
    %v1273 = vld [vmem:[#allocation9 + $0x18] sm:$0xff]
    %v1274 = vld [vmem:[#allocation9 + $0x20] sm:$0xff]
    %v1275 = vld [vmem:[#allocation9 + $0x28] sm:$0xff]
    %v1276 = vld [vmem:[#allocation9 + $0x30] sm:$0xff]
    %v1277 = vld [vmem:[#allocation9 + $0x38] sm:$0xff]
    %v1278 = vld [vmem:[#allocation9 + $0x40] sm:$0xff]
    %v1279 = vld [vmem:[#allocation9 + $0x48] sm:$0xff]
    %v1280 = vld [vmem:[#allocation9 + $0x50] sm:$0xff]
    %v1281 = vld [vmem:[#allocation9 + $0x58] sm:$0xff]
    %v1282 = vld [vmem:[#allocation9 + $0x60] sm:$0xff]
    %v1283 = vld [vmem:[#allocation9 + $0x68] sm:$0xff]
    %v1284 = vld [vmem:[#allocation9 + $0x70] sm:$0xff]
    %v1285 = vld [vmem:[#allocation9 + $0x78] sm:$0xff]
    %v1286 = vld [vmem:[#allocation9 + $0x80] sm:$0xff]
    %v1287 = vld [vmem:[#allocation9 + $0x88] sm:$0xff]
    %v1288 = vld [vmem:[#allocation9 + $0x90] sm:$0xff]
    %v1289 = vld [vmem:[#allocation9 + $0x98] sm:$0xff]
    %v1290 = vld [vmem:[#allocation9 + $0xa0] sm:$0xff]
    %v1291 = vld [vmem:[#allocation9 + $0xa8] sm:$0xff]
    %v1292 = vld [vmem:[#allocation9 + $0xb0] sm:$0xff]
    %v1293 = vld [vmem:[#allocation9 + $0xb8] sm:$0xff]
    %v1294 = vld [vmem:[#allocation9 + $0xc0] sm:$0xff]
    %v1295 = vld [vmem:[#allocation9 + $0xc8] sm:$0xff]
    %v1296 = vld [vmem:[#allocation9 + $0xd0] sm:$0xff]
    %v1297 = vld [vmem:[#allocation9 + $0xd8] sm:$0xff]
    %v1298 = vld [vmem:[#allocation9 + $0xe0] sm:$0xff]
    %v1299 = vld [vmem:[#allocation9 + $0xe8] sm:$0xff]
    %v1300 = vld [vmem:[#allocation9 + $0xf0] sm:$0xff]
    %v1301 = vld [vmem:[#allocation9 + $0xf8] sm:$0xff]
    %v1302 = vld [vmem:[#allocation9 + $0x100] sm:$0xff]
    %v1303 = vld [vmem:[#allocation9 + $0x108] sm:$0xff]
    %v1304 = vld [vmem:[#allocation9 + $0x110] sm:$0xff]
    %v1305 = vld [vmem:[#allocation9 + $0x118] sm:$0xff]
    %v1306 = vld [vmem:[#allocation9 + $0x120] sm:$0xff]
    %v1307 = vld [vmem:[#allocation9 + $0x128] sm:$0xff]
    %v1308 = vld [vmem:[#allocation9 + $0x130] sm:$0xff]
    %v1309 = vld [vmem:[#allocation9 + $0x138] sm:$0xff]
    %v1310 = vld [vmem:[#allocation9 + $0x140] sm:$0xff]
    %v1311 = vld [vmem:[#allocation9 + $0x148] sm:$0xff]
    %v1312 = vld [vmem:[#allocation9 + $0x150] sm:$0xff]
    %v1313 = vld [vmem:[#allocation9 + $0x158] sm:$0xff]
    %v1314 = vld [vmem:[#allocation9 + $0x160] sm:$0xff]
    %v1315 = vld [vmem:[#allocation9 + $0x168] sm:$0xff]
    %v1316 = vld [vmem:[#allocation9 + $0x170] sm:$0xff]
    %v1317 = vld [vmem:[#allocation9 + $0x178] sm:$0xff]
    %v1318 = vld [vmem:[#allocation9 + $0x180] sm:$0xff]
    %v1319 = vld [vmem:[#allocation9 + $0x188] sm:$0xff]
    %v1320 = vld [vmem:[#allocation9 + $0x190] sm:$0xff]
    %v1321 = vld [vmem:[#allocation9 + $0x198] sm:$0xff]
    %v1322 = vld [vmem:[#allocation9 + $0x1a0] sm:$0xff]
    %v1323 = vld [vmem:[#allocation9 + $0x1a8] sm:$0xff]
    %v1324 = vld [vmem:[#allocation9 + $0x1b0] sm:$0xff]
    %v1325 = vld [vmem:[#allocation9 + $0x1b8] sm:$0xff]
    %v1326 = vld [vmem:[#allocation9 + $0x1c0] sm:$0xff]
    %v1327 = vld [vmem:[#allocation9 + $0x1c8] sm:$0xff]
    %v1328 = vld [vmem:[#allocation9 + $0x1d0] sm:$0xff]
    %v1329 = vld [vmem:[#allocation9 + $0x1d8] sm:$0xff]
    %v1330 = vld [vmem:[#allocation9 + $0x1e0] sm:$0xff]
    %v1331 = vld [vmem:[#allocation9 + $0x1e8] sm:$0xff]
    %v1332 = vld [vmem:[#allocation9 + $0x1f0] sm:$0xff]
    %v1333 = vld [vmem:[#allocation9 + $0x1f8] sm:$0xff]
    %v1334 = vld [vmem:[#allocation9 + $0x200] sm:$0xff]
    %v1335 = vld [vmem:[#allocation9 + $0x208] sm:$0xff]
    %v1336 = vld [vmem:[#allocation9 + $0x210] sm:$0xff]
    %v1337 = vld [vmem:[#allocation9 + $0x218] sm:$0xff]
    %v1338 = vld [vmem:[#allocation9 + $0x220] sm:$0xff]
    %v1339 = vld [vmem:[#allocation9 + $0x228] sm:$0xff]
    %v1340 = vld [vmem:[#allocation9 + $0x230] sm:$0xff]
    %v1341 = vld [vmem:[#allocation9 + $0x238] sm:$0xff]
    %v1342 = vld [vmem:[#allocation9 + $0x240] sm:$0xff]
    %v1343 = vld [vmem:[#allocation9 + $0x248] sm:$0xff]
    %v1344 = vld [vmem:[#allocation9 + $0x250] sm:$0xff]
    %v1345 = vld [vmem:[#allocation9 + $0x258] sm:$0xff]
    %v1346 = vld [vmem:[#allocation9 + $0x260] sm:$0xff]
    %v1347 = vld [vmem:[#allocation9 + $0x268] sm:$0xff]
    %v1348 = vld [vmem:[#allocation9 + $0x270] sm:$0xff]
    %v1349 = vld [vmem:[#allocation9 + $0x278] sm:$0xff]
    %1350 = vmatpush.msra.mxu0 %v1285
    %1351 = vmatpush.msra.mxu0 %v1284
    %1352 = vmatpush.msra.mxu0 %v1283
    %1353 = vmatpush.msra.mxu0 %v1282
    %1354 = vmatpush.msra.mxu0 %v1281
    %1355 = vmatpush.msra.mxu0 %v1280
    %1356 = vmatpush.msra.mxu0 %v1279
    %1357 = vmatpush.msra.mxu0 %v1278
    %1358 = vmatpush.msra.mxu0 %v1277
    %1359 = vmatpush.msra.mxu0 %v1276
    %1360 = vmatpush.msra.mxu0 %v1275
    %1361 = vmatpush.msra.mxu0 %v1274
    %1362 = vmatpush.msra.mxu0 %v1273
    %1363 = vmatpush.msra.mxu0 %v1272
    %1364 = vmatpush.msra.mxu0 %v1271
    %1365 = vmatpush.msra.mxu0 %v1270
    %1366 = vmatmul.f32.gmra.mxu0 %v1260
    %v1367 = vpop.f32.mrf.mxu0
    %v1368 = vadd.f32 0.0, %v1367
    %1369 = vmatmul.f32.gmra.mxu0 %v1265
    %v1370 = vpop.f32.mrf.mxu0
    %v1371 = vadd.f32 0.0, %v1370
    %1372 = vdwg.mxu0
    %1373 = vmatpush.msra.mxu0 %v1301
    %1374 = vmatpush.msra.mxu0 %v1300
    %1375 = vmatpush.msra.mxu0 %v1299
    %1376 = vmatpush.msra.mxu0 %v1298
    %1377 = vmatpush.msra.mxu0 %v1297
    %1378 = vmatpush.msra.mxu0 %v1296
    %1379 = vmatpush.msra.mxu0 %v1295
    %1380 = vmatpush.msra.mxu0 %v1294
    %1381 = vmatpush.msra.mxu0 %v1293
    %1382 = vmatpush.msra.mxu0 %v1292
    %1383 = vmatpush.msra.mxu0 %v1291
    %1384 = vmatpush.msra.mxu0 %v1290
    %1385 = vmatpush.msra.mxu0 %v1289
    %1386 = vmatpush.msra.mxu0 %v1288
    %1387 = vmatpush.msra.mxu0 %v1287
    %1388 = vmatpush.msra.mxu0 %v1286
    %1389 = vmatmul.f32.gmra.mxu0 %v1261
    %v1390 = vpop.f32.mrf.mxu0
    %v1391 = vadd.f32 %v1368, %v1390
    %1392 = vmatmul.f32.gmra.mxu0 %v1266
    %v1393 = vpop.f32.mrf.mxu0
    %v1394 = vadd.f32 %v1371, %v1393
    %1395 = vdwg.mxu0
    %1396 = vmatpush.msra.mxu0 %v1317
    %1397 = vmatpush.msra.mxu0 %v1316
    %1398 = vmatpush.msra.mxu0 %v1315
    %1399 = vmatpush.msra.mxu0 %v1314
    %1400 = vmatpush.msra.mxu0 %v1313
    %1401 = vmatpush.msra.mxu0 %v1312
    %1402 = vmatpush.msra.mxu0 %v1311
    %1403 = vmatpush.msra.mxu0 %v1310
    %1404 = vmatpush.msra.mxu0 %v1309
    %1405 = vmatpush.msra.mxu0 %v1308
    %1406 = vmatpush.msra.mxu0 %v1307
    %1407 = vmatpush.msra.mxu0 %v1306
    %1408 = vmatpush.msra.mxu0 %v1305
    %1409 = vmatpush.msra.mxu0 %v1304
    %1410 = vmatpush.msra.mxu0 %v1303
    %1411 = vmatpush.msra.mxu0 %v1302
    %1412 = vmatmul.f32.gmra.mxu0 %v1262
    %v1413 = vpop.f32.mrf.mxu0
    %v1414 = vadd.f32 %v1391, %v1413
    %1415 = vmatmul.f32.gmra.mxu0 %v1267
    %v1416 = vpop.f32.mrf.mxu0
    %v1417 = vadd.f32 %v1394, %v1416
    %1418 = vdwg.mxu0
    %1419 = vmatpush.msra.mxu0 %v1333
    %1420 = vmatpush.msra.mxu0 %v1332
    %1421 = vmatpush.msra.mxu0 %v1331
    %1422 = vmatpush.msra.mxu0 %v1330
    %1423 = vmatpush.msra.mxu0 %v1329
    %1424 = vmatpush.msra.mxu0 %v1328
    %1425 = vmatpush.msra.mxu0 %v1327
    %1426 = vmatpush.msra.mxu0 %v1326
    %1427 = vmatpush.msra.mxu0 %v1325
    %1428 = vmatpush.msra.mxu0 %v1324
    %1429 = vmatpush.msra.mxu0 %v1323
    %1430 = vmatpush.msra.mxu0 %v1322
    %1431 = vmatpush.msra.mxu0 %v1321
    %1432 = vmatpush.msra.mxu0 %v1320
    %1433 = vmatpush.msra.mxu0 %v1319
    %1434 = vmatpush.msra.mxu0 %v1318
    %1435 = vmatmul.f32.gmra.mxu0 %v1263
    %v1436 = vpop.f32.mrf.mxu0
    %v1437 = vadd.f32 %v1414, %v1436
    %1438 = vmatmul.f32.gmra.mxu0 %v1268
    %v1439 = vpop.f32.mrf.mxu0
    %v1440 = vadd.f32 %v1417, %v1439
    %1441 = vdwg.mxu0
    %1442 = vmatpush.msra.mxu0 %v1349
    %1443 = vmatpush.msra.mxu0 %v1348
    %1444 = vmatpush.msra.mxu0 %v1347
    %1445 = vmatpush.msra.mxu0 %v1346
    %1446 = vmatpush.msra.mxu0 %v1345
    %1447 = vmatpush.msra.mxu0 %v1344
    %1448 = vmatpush.msra.mxu0 %v1343
    %1449 = vmatpush.msra.mxu0 %v1342
    %1450 = vmatpush.msra.mxu0 %v1341
    %1451 = vmatpush.msra.mxu0 %v1340
    %1452 = vmatpush.msra.mxu0 %v1339
    %1453 = vmatpush.msra.mxu0 %v1338
    %1454 = vmatpush.msra.mxu0 %v1337
    %1455 = vmatpush.msra.mxu0 %v1336
    %1456 = vmatpush.msra.mxu0 %v1335
    %1457 = vmatpush.msra.mxu0 %v1334
    %1458 = vmatmul.f32.gmra.mxu0 %v1264
    %v1459 = vpop.f32.mrf.mxu0
    %v1460 = vadd.f32 %v1437, %v1459
    %1461 = vmatmul.f32.gmra.mxu0 %v1269
    %v1462 = vpop.f32.mrf.mxu0
    %v1463 = vadd.f32 %v1440, %v1462
    %1464 = vdwg.mxu0
    %v1465 = vadd.f32 %v88, %v1460
    %v1466 = vadd.f32 %v89, %v1463
    %v1467 = vld [vmem:[%s4] sm:$0x1]
    %v1469 = vperm.slane %v1467, 0
    %v1471 = vadd.f32 %v1465, %v1469
    %v1472 = vadd.f32 %v1466, %v1469
    %1473 = vadd.xlane.f32.xlu0 %v1471
    %v1474 = vpop.xlane.xlu0 %1473
    %1475 = vadd.xlane.f32.xlu0 %v1472
    %v1476 = vpop.xlane.xlu0 %1475
    %v1477 = vmul.f32 %v1474, 0.033333335
    %v1478 = vmul.f32 %v1476, 0.033333335
    %v1479 = vmul.f32 %v1471, %v1471
    %v1480 = vmul.f32 %v1472, %v1472
    %1481 = vadd.xlane.f32.xlu0 %v1479
    %v1482 = vpop.xlane.xlu0 %1481
    %1483 = vadd.xlane.f32.xlu0 %v1480
    %v1484 = vpop.xlane.xlu0 %1483
    %v1485 = vmul.f32 %v1482, 0.033333335
    %v1486 = vmul.f32 %v1484, 0.033333335
    %v1487 = vmul.f32 %v1477, %v1477
    %v1488 = vmul.f32 %v1478, %v1478
    %v1489 = vsub.f32 %v1485, %v1487
    %v1490 = vsub.f32 %v1486, %v1488
    %v1491 = vsub.f32 %v1471, %v1477
    %v1492 = vsub.f32 %v1472, %v1478
    %v1493 = vadd.f32 %v1489, 1e-05
    %v1494 = vadd.f32 %v1490, 1e-05
    %v1495 = vrsqrt.pop %v1493
    %v1496 = vmul.f32 %v1495, %v1493
    %v1497 = vmul.f32 %v1496, %v1495
    %v1498 = vmul.f32 0.5, %v1497
    %v1499 = vsub.f32 1.5, %v1498
    %v1500 = vmul.f32 %v1495, %v1499
    %vm1501 = vweird.f32 %v1493
    %vm1502 = vweird.f32 %v1495
    %vm1503 = vmor %vm1501, %vm1502
    %v1504 = vsel %vm1503, %v1495, %v1500
    %v1505 = vrsqrt.pop %v1494
    %v1506 = vmul.f32 %v1505, %v1494
    %v1507 = vmul.f32 %v1506, %v1505
    %v1508 = vmul.f32 0.5, %v1507
    %v1509 = vsub.f32 1.5, %v1508
    %v1510 = vmul.f32 %v1505, %v1509
    %vm1511 = vweird.f32 %v1494
    %vm1512 = vweird.f32 %v1505
    %vm1513 = vmor %vm1511, %vm1512
    %v1514 = vsel %vm1513, %v1505, %v1510
    %v1515 = vmul.f32 %v1491, %v1504
    %v1516 = vmul.f32 %v1492, %v1514
    %v1517 = vld [vmem:[%s5] sm:$0x1]
    %v1519 = vperm.slane %v1517, 0
    %v1521 = vmul.f32 %v1515, %v1519
    %v1522 = vmul.f32 %v1516, %v1519
    %v1523 = vld [vmem:[%s6] sm:$0x1]
    %v1525 = vperm.slane %v1523, 0
    %v1527 = vadd.f32 %v1521, %v1525
    %v1528 = vadd.f32 %v1522, %v1525
    %1529 = vst [vmem:[#allocation11] sm:$0xff] %v1527
    %1530 = vst [vmem:[#allocation11 + $0x8] sm:$0xff] %v1528
    // Predicated region
    $region46: #{tpu_custom_call.1} parent=1 // pred_check
      _
    $region47: #{tpu_custom_call.1} parent=1 // pred_check_branch
      %1532 = sbr.rel (0) target = $region49
    $region48: #{tpu_custom_call.1} parent=1 // pred_region
      %1534 = vsyncadd [#allocation5], 0
      %s1535 = sshll.u32 [#allocation11], 4
      %s1536 = int_to_ptr.vmem [resolvable:$true] %s1535
      %s1537 = sshll.u32 %s7, 4
      %s1538 = int_to_ptr.hbm [resolvable:$true] %s1537
      %1543 = dma.vmem_to_hbm [thread:$0]  %s1536, 256, %s1538, [#allocation5], 128, 128, 8
    $region49: #{tpu_custom_call.1} parent=1 // pred_fallthru
      _
    // Predicated region
    $region50: #{tpu_custom_call.1} parent=1 // pred_check
      _
    $region51: #{tpu_custom_call.1} parent=1 // pred_check_branch
      %1545 = sbr.rel (0) target = $region53
    $region52: #{tpu_custom_call.1} parent=1 // pred_region
      %1547 = dma.done [#allocation5], 256
    $region53: #{tpu_custom_call.1} parent=1 // pred_fallthru
      _
    %1548 = vsyncpa [#allocation4], 1
    %1549 = vsyncpa [#allocation7], 1
    %1550 = vsyncpa [#allocation10], 1
    %1551 = vsyncpa [#allocation5], 1

</llo_original>
